<compile_context>
chip_gen: v5e
topology: v5e:2x2
jax: 0.10.0
libtpu: 0.0.40
codegen_flags: <defaults>
</compile_context>

<pallas_src>
import functools

import jax
import jax.numpy as jnp
from jax import lax
from jax.experimental import pallas as pl
from jax.experimental.pallas import tpu as pltpu


# ---------------------------------------------------------------------------
# Pallas kernels
# ---------------------------------------------------------------------------
def _routing_kernel(win_ref, w_ref, bias_ref, g_ref, mask_ref, out_ref,
                    *, num_iterations, inv_r, batch):
    """One window position of dynamic routing, all output capsules at once.

    win_ref  : [1, B, R_pad, R*IC]  block-diagonal im2col window (zero pad rows)
    w_ref    : [R*IC, L]            flattened route weights, L = NC*OC (resident)
    bias_ref : [1, L]               per-(capsule, out_channel) bias (resident)
    g_ref    : [L, L]               capsule-group matrix G[l,m]=1 iff l//OC==m//OC
    mask_ref : [R_pad, 1]           0 for real route nodes, -1e30 for pad rows
    out_ref  : [1, B, L]            squashed capsule outputs (lane-dense store)
    """
    wf = w_ref[...]            # [R*IC, L]
    G = g_ref[...]             # [L, L]
    bias = bias_ref[...]       # [1, L]
    neg_mask = mask_ref[...]   # [R_pad, 1]

    L = G.shape[0]

    def squash(s):  # s: [1, L]
        # per-capsule squared norm via MXU group matmul (stays 128-lane dense)
        sqn = lax.dot_general(s * s, G, (((1,), (0,)), ((), ())),
                              preferred_element_type=jnp.float32)       # [1, L]
        # squash scale = sqrt(|s|^2) / (1 + |s|^2); eps guards |s| == 0 (NaN-free)
        scale = (sqn * lax.rsqrt(sqn + 1e-12)
                 * pl.reciprocal(1.0 + sqn, approx=True))
        return s * scale

    row = lax.broadcasted_iota(jnp.int32, (batch, 1), 0)
    out_acc = jnp.zeros((batch, L), jnp.float32)

    for b in range(batch):                       # B is tiny (static unroll)
        win_b = win_ref[0, b]                    # [R_pad, R*IC]

        # prior projection on the MXU: priors[r, (n,o)] = sum_i win[r,i] W[n,r,i,o]
        priors = lax.dot_general(win_b, wf, (((1,), (0,)), ((), ())),
                                 preferred_element_type=jnp.float32)    # [R_pad, L]

        # --- routing iteration 0: logits == 0  =>  softmax == 1/R exactly ----
        s = inv_r * jnp.sum(priors, axis=0, keepdims=True) + bias        # [1, L]
        v = squash(s)

        logits = jnp.zeros_like(priors)                                  # [R_pad, L]
        for _ in range(1, num_iterations):
            # delta-logits: <priors, v> summed over each capsule's OC lanes and
            # broadcast back within the group, in one MXU matmul with G.
            delta = lax.dot_general(priors * v, G, (((1,), (0,)), ((), ())),
                                    preferred_element_type=jnp.float32)
            logits = logits + delta

            # softmax over route nodes (rows); pad rows masked out.
            lm = logits + neg_mask
            m = jnp.max(lm, axis=0, keepdims=True)                       # [1, L]
            e = jnp.exp(lm - m)
            denom = jnp.sum(e, axis=0, keepdims=True)                    # [1, L]
            probs = e * pl.reciprocal(denom, approx=True)                # [R_pad, L]

            s = jnp.sum(probs * priors, axis=0, keepdims=True) + bias    # [1, L]
            v = squash(s)

        # scatter v into row b of the [B, L] output slab (pure VPU select).
        out_acc = out_acc + jnp.where(row == b, v, 0.0)

    out_ref[0] = out_acc.astype(out_ref.dtype)


def _squash_kernel(x_ref, g_ref, o_ref):
    """Lane-dense squash for the conv-capsule branch.

    x_ref: [N, L] with L = NC*OC (capsule-major, out_channel-minor lanes)
    g_ref: [L, L] capsule-group matrix.
    """
    x = x_ref[...]
    G = g_ref[...]
    sqn = lax.dot_general(x * x, G, (((1,), (0,)), ((), ())),
                          preferred_element_type=jnp.float32)            # [N, L]
    scale = (sqn * lax.rsqrt(sqn + 1e-12)
             * pl.reciprocal(1.0 + sqn, approx=True))
    o_ref[...] = (x * scale).astype(o_ref.dtype)


# ---------------------------------------------------------------------------
# Wrappers (layout plumbing only: im2col, block-diag packing, permutes)
# ---------------------------------------------------------------------------
def _group_matrix(num_capsules, out_channels):
    L = num_capsules * out_channels
    lane = jnp.arange(L)
    return (lane[:, None] // out_channels
            == lane[None, :] // out_channels).astype(jnp.float32)


def capsule_routing_forward(x, route_weights, bias, *, kernel_size, stride,
                            num_iterations=3):
    """Routing branch of CapsuleLayer.forward (num_in_capsules != 1).

    x             : [B, num_in_capsules, H, W, in_channels]
    route_weights : [num_capsules, num_route_nodes, in_channels, out_channels]
    bias          : [num_capsules, out_channels]
    returns       : [B, num_capsules, w_out, w_out, out_channels]
    """
    B, CIC, H, W, IC = x.shape
    NC, R, IC2, OC = route_weights.shape
    assert H == W and IC2 == IC and R == CIC * kernel_size * kernel_size
    w_out = (H - kernel_size) // stride + 1
    P = w_out * w_out
    L = NC * OC
    R_pad = ((R + 7) // 8) * 8          # sublane-align the route-node rows

    # im2col: [P, B, R, IC]  (row-major over (row, col), C-order (CIC, kr, kc))
    wins = []
    for row in range(w_out):
        for col in range(w_out):
            rs, cs = row * stride, col * stride
            win = x[:, :, rs:rs + kernel_size, cs:cs + kernel_size, :]
            wins.append(win.reshape(B, R, IC))
    windows = jnp.stack(wins, axis=0).astype(jnp.float32)        # [P, B, R, IC]

    # Block-diagonal im2col so the in-kernel prior projection is one dense
    # [R_pad, R*IC] @ [R*IC, NC*OC] MXU matmul (layout plumbing, zero FLOPs).
    eye = jnp.eye(R, dtype=jnp.float32)                          # [R, R]
    winbd = windows[:, :, :, None, :] * eye[None, None, :, :, None]
    winbd = winbd.reshape(P, B, R, R * IC)
    winbd = jnp.pad(winbd, ((0, 0), (0, 0), (0, R_pad - R), (0, 0)))

    # route weights -> [R*IC, NC*OC]  (row = r*IC + i, lane = n*OC + o)
    wf = jnp.transpose(route_weights, (1, 2, 0, 3)).reshape(R * IC, L)
    wf = wf.astype(jnp.float32)
    bias_flat = bias.reshape(1, L).astype(jnp.float32)
    G = _group_matrix(NC, OC)
    neg_mask = jnp.where(jnp.arange(R_pad) < R, 0.0, -1e30)
    neg_mask = neg_mask.astype(jnp.float32).reshape(R_pad, 1)

    out = pl.pallas_call(
        functools.partial(_routing_kernel, num_iterations=num_iterations,
                          inv_r=1.0 / R, batch=B),
        out_shape=jax.ShapeDtypeStruct((P, B, L), jnp.float32),
        grid=(P,),
        in_specs=[
            pl.BlockSpec((1, B, R_pad, R * IC), lambda p: (p, 0, 0, 0)),
            pl.BlockSpec((R * IC, L), lambda p: (0, 0)),   # resident weights
            pl.BlockSpec((1, L), lambda p: (0, 0)),        # resident bias
            pl.BlockSpec((L, L), lambda p: (0, 0)),        # resident group matrix
            pl.BlockSpec((R_pad, 1), lambda p: (0, 0)),    # resident pad mask
        ],
        out_specs=pl.BlockSpec((1, B, L), lambda p: (p, 0, 0)),
        compiler_params=pltpu.CompilerParams(
            dimension_semantics=("parallel",)),
    )(winbd, wf, bias_flat, G, neg_mask)

    # [P, B, NC*OC] -> [B, NC, w_out, w_out, OC]  (== torch permute(1,0,2,3,4))
    out = out.reshape(w_out, w_out, B, NC, OC)
    return jnp.transpose(out, (2, 3, 0, 1, 4))


def capsule_conv_forward(x, conv_w, conv_b, *, num_capsules, out_channels,
                         stride):
    """Conv branch of CapsuleLayer.forward (num_in_capsules == 1)."""
    NC, OC = num_capsules, out_channels
    L = NC * OC
    y = lax.conv_general_dilated(
        x, conv_w, window_strides=(stride, stride), padding="VALID",
        dimension_numbers=("NCHW", "OIHW", "NCHW"))
    y = y + conv_b[None, :, None, None]
    B, _, Ho, Wo = y.shape
    # torch: view(B, OC, NC, H, W).permute(0,2,3,4,1); squash over OC
    y = y.reshape(B, OC, NC, Ho, Wo)
    y = jnp.transpose(y, (0, 3, 4, 2, 1))                 # [B, Ho, Wo, NC, OC]
    flat = y.reshape(B * Ho * Wo, L).astype(jnp.float32)  # lane-dense rows

    squashed = pl.pallas_call(
        _squash_kernel,
        out_shape=jax.ShapeDtypeStruct(flat.shape, jnp.float32),
    )(flat, _group_matrix(NC, OC))

    out = squashed.reshape(B, Ho, Wo, NC, OC)
    return jnp.transpose(out, (0, 3, 1, 2, 4))            # [B, NC, Ho, Wo, OC]


# ---------------------------------------------------------------------------
# Pure-JAX references (correctness checks)
# ---------------------------------------------------------------------------
def _routing_reference(x, route_weights, bias, kernel_size, stride, num_iters):
    B, CIC, H, W, IC = x.shape
    NC, R, _, OC = route_weights.shape
    w_out = (H - kernel_size) // stride + 1
    out = jnp.zeros((B, NC, w_out, w_out, OC), jnp.float32)
    for row in range(w_out):
        for col in range(w_out):
            rs, cs = row * stride, col * stride
            win = x[:, :, rs:rs + kernel_size, cs:cs + kernel_size, :]
            win = win.reshape(B, R, IC)
            priors = jnp.einsum("bri,nrio->nbro", win, route_weights)
            logits = jnp.zeros((NC, B, R), jnp.float32)
            v = None
            for i in range(num_iters):
                probs = jax.nn.softmax(logits, axis=-1)
                s = jnp.sum(probs[..., None] * priors, axis=2) + bias[:, None, :]
                sqn = jnp.sum(s * s, axis=-1, keepdims=True)
                v = (sqn / (1.0 + sqn)) * s / jnp.sqrt(sqn)
                if i != num_iters - 1:
                    logits = logits + jnp.sum(priors * v[:, :, None, :], axis=-1)
            out = out.at[:, :, row, col, :].set(jnp.transpose(v, (1, 0, 2)))
    return out


def _conv_reference(x, conv_w, conv_b, num_capsules, out_channels, stride):
    y = lax.conv_general_dilated(
        x, conv_w, window_strides=(stride, stride), padding="VALID",
        dimension_numbers=("NCHW", "OIHW", "NCHW"))
    y = y + conv_b[None, :, None, None]
    B, _, Ho, Wo = y.shape
    y = y.reshape(B, out_channels, num_capsules, Ho, Wo)
    y = jnp.transpose(y, (0, 2, 3, 4, 1))
    sqn = jnp.sum(y * y, axis=-1, keepdims=True)
    return (sqn / (1.0 + sqn)) * y / jnp.sqrt(sqn)


# ---------------------------------------------------------------------------
if __name__ == "__main__":
    key = jax.random.PRNGKey(0)
    k1, k2, k3, k4, k5, k6 = jax.random.split(key, 6)

    # --- routing branch (num_in_capsules != 1) ------------------------------
    B, CIC, H, IC = 2, 4, 8, 8          # batch, in-capsules, spatial, in_channels
    NC, OC = 8, 16                      # num_capsules, out_channels (NC*OC = 128)
    K, STRIDE, ITERS = 3, 2, 3
    R = CIC * K * K                     # num_route_nodes = 36

    x = jax.random.normal(k1, (B, CIC, H, H, IC), dtype=jnp.float32)
    route_weights = jax.random.normal(k2, (NC, R, IC, OC), dtype=jnp.float32)
    bias = 0.1 * jax.random.normal(k6, (NC, OC), dtype=jnp.float32)

    out_routing = capsule_routing_forward(
        x, route_weights, bias, kernel_size=K, stride=STRIDE,
        num_iterations=ITERS)
    out_routing = jax.block_until_ready(out_routing)
    assert out_routing.shape == (B, NC, 3, 3, OC)

    ref = _routing_reference(x, route_weights, bias, K, STRIDE, ITERS)
    err = float(jnp.max(jnp.abs(out_routing - ref)))
    # tolerance accounts for EUP approximate reciprocal in softmax/squash
    assert err < 2e-2, f"routing kernel mismatch vs JAX reference (max err {err})"

    # --- conv branch (num_in_capsules == 1) ----------------------------------
    IN_CH = 4
    x2 = jax.random.normal(k3, (B, IN_CH, H, H), dtype=jnp.float32)
    conv_w = 0.1 * jax.random.normal(k4, (NC * OC, IN_CH, K, K), dtype=jnp.float32)
    conv_b = 0.1 * jax.random.normal(k5, (NC * OC,), dtype=jnp.float32)

    out_conv = capsule_conv_forward(
        x2, conv_w, conv_b, num_capsules=NC, out_channels=OC, stride=STRIDE)
    out_conv = jax.block_until_ready(out_conv)
    assert out_conv.shape == (B, NC, 3, 3, OC)

    ref_conv = _conv_reference(x2, conv_w, conv_b, NC, OC, STRIDE)
    err_c = float(jnp.max(jnp.abs(out_conv - ref_conv)))
    assert err_c < 2e-2, f"conv-branch squash mismatch (max err {err_c})"

    print("KERNEL_OK")
</pallas_src>

<mosaic_0001>
module attributes {stable_mosaic.version = 11 : i64} {
  func.func @_routing_kernel(%arg0: i32, %arg1: memref<1x2x40x288xf32, #tpu.memory_space<vmem>>, %arg2: memref<288x128xf32, #tpu.memory_space<vmem>>, %arg3: memref<1x128xf32, #tpu.memory_space<vmem>>, %arg4: memref<128x128xf32, #tpu.memory_space<vmem>>, %arg5: memref<40x1xf32, #tpu.memory_space<vmem>>, %arg6: memref<1x2x128xf32, #tpu.memory_space<vmem>>) attributes {dimension_semantics = [#tpu.dimension_semantics<parallel>], iteration_bounds = array<i64: 9>, scalar_prefetch = 0 : i64, scratch_operands = 0 : i64, tpu.core_type = #tpu.core_type<tc>, window_params = [{transform_indices = @transform_0, window_bounds = array<i64: 1, 2, 40, 288>}, {pipeline_mode = #tpu.pipeline_mode<synchronous>, transform_indices = @transform_1, window_bounds = array<i64: 288, 128>}, {pipeline_mode = #tpu.pipeline_mode<synchronous>, transform_indices = @transform_2, window_bounds = array<i64: 1, 128>}, {pipeline_mode = #tpu.pipeline_mode<synchronous>, transform_indices = @transform_3, window_bounds = array<i64: 128, 128>}, {pipeline_mode = #tpu.pipeline_mode<synchronous>, transform_indices = @transform_4, window_bounds = array<i64: 40, 1>}, {transform_indices = @transform_5, window_bounds = array<i64: 1, 2, 128>}]} {
    %c0 = arith.constant 0 : index
    %c0_0 = arith.constant 0 : index
    %0 = vector.load %arg2[%c0, %c0_0] : memref<288x128xf32, #tpu.memory_space<vmem>>, vector<288x128xf32>
    %c0_1 = arith.constant 0 : index
    %c0_2 = arith.constant 0 : index
    %1 = vector.load %arg4[%c0_1, %c0_2] : memref<128x128xf32, #tpu.memory_space<vmem>>, vector<128x128xf32>
    %c0_3 = arith.constant 0 : index
    %c0_4 = arith.constant 0 : index
    %2 = vector.load %arg3[%c0_3, %c0_4] : memref<1x128xf32, #tpu.memory_space<vmem>>, vector<1x128xf32>
    %c0_5 = arith.constant 0 : index
    %c0_6 = arith.constant 0 : index
    %3 = vector.load %arg5[%c0_5, %c0_6] : memref<40x1xf32, #tpu.memory_space<vmem>>, vector<40x1xf32>
    %4 = tpu.iota {dimensions = array<i32: 0>} : vector<2x1xi32>
    %cst = arith.constant 0.000000e+00 : f32
    %5 = vector.broadcast %cst : f32 to vector<2x128xf32>
    %c0_7 = arith.constant 0 : index
    %c0_8 = arith.constant 0 : index
    %c0_9 = arith.constant 0 : index
    %c0_10 = arith.constant 0 : index
    %6 = vector.load %arg1[%c0_7, %c0_8, %c0_9, %c0_10] : memref<1x2x40x288xf32, #tpu.memory_space<vmem>>, vector<1x1x40x288xf32>
    %7 = vector.shape_cast %6 : vector<1x1x40x288xf32> to vector<40x288xf32>
    %cst_11 = arith.constant dense<0.000000e+00> : vector<40x128xf32>
    %8 = tpu.matmul %7, %0, %cst_11 {dimension_numbers = #tpu.dot_dimension_numbers<[1], [0], [0], [1], [0, 0, 1, 1], [], []>} : vector<40x288xf32>, vector<288x128xf32>, vector<40x128xf32> -> vector<40x128xf32>
    %cst_12 = arith.constant dense<0.000000e+00> : vector<128xf32>
    %9 = vector.multi_reduction <add>, %8, %cst_12 [0] : vector<40x128xf32> to vector<128xf32>
    %10 = vector.shape_cast %9 : vector<128xf32> to vector<1x128xf32>
    %cst_13 = arith.constant 0.027777778 : f32
    %11 = vector.broadcast %cst_13 : f32 to vector<1x128xf32>
    %12 = arith.mulf %11, %10 : vector<1x128xf32>
    %13 = arith.addf %12, %2 : vector<1x128xf32>
    %14 = arith.mulf %13, %13 : vector<1x128xf32>
    %cst_14 = arith.constant dense<0.000000e+00> : vector<1x128xf32>
    %15 = tpu.matmul %14, %1, %cst_14 {dimension_numbers = #tpu.dot_dimension_numbers<[1], [0], [0], [1], [0, 0, 1, 1], [], []>} : vector<1x128xf32>, vector<128x128xf32>, vector<1x128xf32> -> vector<1x128xf32>
    %cst_15 = arith.constant 9.99999996E-13 : f32
    %16 = vector.broadcast %cst_15 : f32 to vector<1x128xf32>
    %17 = arith.addf %15, %16 : vector<1x128xf32>
    %18 = math.rsqrt %17 : vector<1x128xf32>
    %19 = arith.mulf %15, %18 : vector<1x128xf32>
    %cst_16 = arith.constant 1.000000e+00 : f32
    %20 = vector.broadcast %cst_16 : f32 to vector<1x128xf32>
    %21 = arith.addf %20, %15 : vector<1x128xf32>
    %22 = tpu.reciprocal %21 {approx = true} : vector<1x128xf32> -> vector<1x128xf32>
    %23 = arith.mulf %19, %22 : vector<1x128xf32>
    %24 = arith.mulf %13, %23 : vector<1x128xf32>
    %cst_17 = arith.constant 0.000000e+00 : f32
    %25 = vector.broadcast %cst_17 : f32 to vector<40x128xf32>
    %26 = vector.broadcast %24 : vector<1x128xf32> to vector<40x128xf32>
    %27 = arith.mulf %8, %26 : vector<40x128xf32>
    %cst_18 = arith.constant dense<0.000000e+00> : vector<40x128xf32>
    %28 = tpu.matmul %27, %1, %cst_18 {dimension_numbers = #tpu.dot_dimension_numbers<[1], [0], [0], [1], [0, 0, 1, 1], [], []>} : vector<40x128xf32>, vector<128x128xf32>, vector<40x128xf32> -> vector<40x128xf32>
    %29 = arith.addf %25, %28 : vector<40x128xf32>
    %30 = vector.broadcast %3 : vector<40x1xf32> to vector<40x128xf32>
    %31 = arith.addf %29, %30 : vector<40x128xf32>
    %cst_19 = arith.constant dense<0xFF800000> : vector<128xf32>
    %32 = vector.multi_reduction <maximumf>, %31, %cst_19 [0] : vector<40x128xf32> to vector<128xf32>
    %33 = vector.shape_cast %32 : vector<128xf32> to vector<1x128xf32>
    %34 = vector.broadcast %33 : vector<1x128xf32> to vector<40x128xf32>
    %35 = arith.subf %31, %34 : vector<40x128xf32>
    %36 = math.exp %35 : vector<40x128xf32>
    %cst_20 = arith.constant dense<0.000000e+00> : vector<128xf32>
    %37 = vector.multi_reduction <add>, %36, %cst_20 [0] : vector<40x128xf32> to vector<128xf32>
    %38 = vector.shape_cast %37 : vector<128xf32> to vector<1x128xf32>
    %39 = tpu.reciprocal %38 {approx = true} : vector<1x128xf32> -> vector<1x128xf32>
    %40 = vector.broadcast %39 : vector<1x128xf32> to vector<40x128xf32>
    %41 = arith.mulf %36, %40 : vector<40x128xf32>
    %42 = arith.mulf %41, %8 : vector<40x128xf32>
    %cst_21 = arith.constant dense<0.000000e+00> : vector<128xf32>
    %43 = vector.multi_reduction <add>, %42, %cst_21 [0] : vector<40x128xf32> to vector<128xf32>
    %44 = vector.shape_cast %43 : vector<128xf32> to vector<1x128xf32>
    %45 = arith.addf %44, %2 : vector<1x128xf32>
    %46 = arith.mulf %45, %45 : vector<1x128xf32>
    %cst_22 = arith.constant dense<0.000000e+00> : vector<1x128xf32>
    %47 = tpu.matmul %46, %1, %cst_22 {dimension_numbers = #tpu.dot_dimension_numbers<[1], [0], [0], [1], [0, 0, 1, 1], [], []>} : vector<1x128xf32>, vector<128x128xf32>, vector<1x128xf32> -> vector<1x128xf32>
    %cst_23 = arith.constant 9.99999996E-13 : f32
    %48 = vector.broadcast %cst_23 : f32 to vector<1x128xf32>
    %49 = arith.addf %47, %48 : vector<1x128xf32>
    %50 = math.rsqrt %49 : vector<1x128xf32>
    %51 = arith.mulf %47, %50 : vector<1x128xf32>
    %cst_24 = arith.constant 1.000000e+00 : f32
    %52 = vector.broadcast %cst_24 : f32 to vector<1x128xf32>
    %53 = arith.addf %52, %47 : vector<1x128xf32>
    %54 = tpu.reciprocal %53 {approx = true} : vector<1x128xf32> -> vector<1x128xf32>
    %55 = arith.mulf %51, %54 : vector<1x128xf32>
    %56 = arith.mulf %45, %55 : vector<1x128xf32>
    %57 = vector.broadcast %56 : vector<1x128xf32> to vector<40x128xf32>
    %58 = arith.mulf %8, %57 : vector<40x128xf32>
    %cst_25 = arith.constant dense<0.000000e+00> : vector<40x128xf32>
    %59 = tpu.matmul %58, %1, %cst_25 {dimension_numbers = #tpu.dot_dimension_numbers<[1], [0], [0], [1], [0, 0, 1, 1], [], []>} : vector<40x128xf32>, vector<128x128xf32>, vector<40x128xf32> -> vector<40x128xf32>
    %60 = arith.addf %29, %59 : vector<40x128xf32>
    %61 = vector.broadcast %3 : vector<40x1xf32> to vector<40x128xf32>
    %62 = arith.addf %60, %61 : vector<40x128xf32>
    %cst_26 = arith.constant dense<0xFF800000> : vector<128xf32>
    %63 = vector.multi_reduction <maximumf>, %62, %cst_26 [0] : vector<40x128xf32> to vector<128xf32>
    %64 = vector.shape_cast %63 : vector<128xf32> to vector<1x128xf32>
    %65 = vector.broadcast %64 : vector<1x128xf32> to vector<40x128xf32>
    %66 = arith.subf %62, %65 : vector<40x128xf32>
    %67 = math.exp %66 : vector<40x128xf32>
    %cst_27 = arith.constant dense<0.000000e+00> : vector<128xf32>
    %68 = vector.multi_reduction <add>, %67, %cst_27 [0] : vector<40x128xf32> to vector<128xf32>
    %69 = vector.shape_cast %68 : vector<128xf32> to vector<1x128xf32>
    %70 = tpu.reciprocal %69 {approx = true} : vector<1x128xf32> -> vector<1x128xf32>
    %71 = vector.broadcast %70 : vector<1x128xf32> to vector<40x128xf32>
    %72 = arith.mulf %67, %71 : vector<40x128xf32>
    %73 = arith.mulf %72, %8 : vector<40x128xf32>
    %cst_28 = arith.constant dense<0.000000e+00> : vector<128xf32>
    %74 = vector.multi_reduction <add>, %73, %cst_28 [0] : vector<40x128xf32> to vector<128xf32>
    %75 = vector.shape_cast %74 : vector<128xf32> to vector<1x128xf32>
    %76 = arith.addf %75, %2 : vector<1x128xf32>
    %77 = arith.mulf %76, %76 : vector<1x128xf32>
    %cst_29 = arith.constant dense<0.000000e+00> : vector<1x128xf32>
    %78 = tpu.matmul %77, %1, %cst_29 {dimension_numbers = #tpu.dot_dimension_numbers<[1], [0], [0], [1], [0, 0, 1, 1], [], []>} : vector<1x128xf32>, vector<128x128xf32>, vector<1x128xf32> -> vector<1x128xf32>
    %cst_30 = arith.constant 9.99999996E-13 : f32
    %79 = vector.broadcast %cst_30 : f32 to vector<1x128xf32>
    %80 = arith.addf %78, %79 : vector<1x128xf32>
    %81 = math.rsqrt %80 : vector<1x128xf32>
    %82 = arith.mulf %78, %81 : vector<1x128xf32>
    %cst_31 = arith.constant 1.000000e+00 : f32
    %83 = vector.broadcast %cst_31 : f32 to vector<1x128xf32>
    %84 = arith.addf %83, %78 : vector<1x128xf32>
    %85 = tpu.reciprocal %84 {approx = true} : vector<1x128xf32> -> vector<1x128xf32>
    %86 = arith.mulf %82, %85 : vector<1x128xf32>
    %87 = arith.mulf %76, %86 : vector<1x128xf32>
    %c0_i32 = arith.constant 0 : i32
    %88 = vector.broadcast %c0_i32 : i32 to vector<2x1xi32>
    %89 = arith.cmpi eq, %4, %88 : vector<2x1xi32>
    %cst_32 = arith.constant 0.000000e+00 : f32
    %90 = vector.shape_cast %89 : vector<2x1xi1> to vector<2x1xi1>
    %91 = vector.broadcast %90 : vector<2x1xi1> to vector<2x128xi1>
    %92 = vector.shape_cast %87 : vector<1x128xf32> to vector<1x128xf32>
    %93 = vector.broadcast %92 : vector<1x128xf32> to vector<2x128xf32>
    %94 = vector.broadcast %cst_32 : f32 to vector<2x128xf32>
    %95 = arith.select %91, %93, %94 : vector<2x128xi1>, vector<2x128xf32>
    %96 = arith.addf %5, %95 : vector<2x128xf32>
    %c0_33 = arith.constant 0 : index
    %c1 = arith.constant 1 : index
    %c0_34 = arith.constant 0 : index
    %c0_35 = arith.constant 0 : index
    %97 = vector.load %arg1[%c0_33, %c1, %c0_34, %c0_35] : memref<1x2x40x288xf32, #tpu.memory_space<vmem>>, vector<1x1x40x288xf32>
    %98 = vector.shape_cast %97 : vector<1x1x40x288xf32> to vector<40x288xf32>
    %cst_36 = arith.constant dense<0.000000e+00> : vector<40x128xf32>
    %99 = tpu.matmul %98, %0, %cst_36 {dimension_numbers = #tpu.dot_dimension_numbers<[1], [0], [0], [1], [0, 0, 1, 1], [], []>} : vector<40x288xf32>, vector<288x128xf32>, vector<40x128xf32> -> vector<40x128xf32>
    %cst_37 = arith.constant dense<0.000000e+00> : vector<128xf32>
    %100 = vector.multi_reduction <add>, %99, %cst_37 [0] : vector<40x128xf32> to vector<128xf32>
    %101 = vector.shape_cast %100 : vector<128xf32> to vector<1x128xf32>
    %cst_38 = arith.constant 0.027777778 : f32
    %102 = vector.broadcast %cst_38 : f32 to vector<1x128xf32>
    %103 = arith.mulf %102, %101 : vector<1x128xf32>
    %104 = arith.addf %103, %2 : vector<1x128xf32>
    %105 = arith.mulf %104, %104 : vector<1x128xf32>
    %cst_39 = arith.constant dense<0.000000e+00> : vector<1x128xf32>
    %106 = tpu.matmul %105, %1, %cst_39 {dimension_numbers = #tpu.dot_dimension_numbers<[1], [0], [0], [1], [0, 0, 1, 1], [], []>} : vector<1x128xf32>, vector<128x128xf32>, vector<1x128xf32> -> vector<1x128xf32>
    %cst_40 = arith.constant 9.99999996E-13 : f32
    %107 = vector.broadcast %cst_40 : f32 to vector<1x128xf32>
    %108 = arith.addf %106, %107 : vector<1x128xf32>
    %109 = math.rsqrt %108 : vector<1x128xf32>
    %110 = arith.mulf %106, %109 : vector<1x128xf32>
    %cst_41 = arith.constant 1.000000e+00 : f32
    %111 = vector.broadcast %cst_41 : f32 to vector<1x128xf32>
    %112 = arith.addf %111, %106 : vector<1x128xf32>
    %113 = tpu.reciprocal %112 {approx = true} : vector<1x128xf32> -> vector<1x128xf32>
    %114 = arith.mulf %110, %113 : vector<1x128xf32>
    %115 = arith.mulf %104, %114 : vector<1x128xf32>
    %cst_42 = arith.constant 0.000000e+00 : f32
    %116 = vector.broadcast %cst_42 : f32 to vector<40x128xf32>
    %117 = vector.broadcast %115 : vector<1x128xf32> to vector<40x128xf32>
    %118 = arith.mulf %99, %117 : vector<40x128xf32>
    %cst_43 = arith.constant dense<0.000000e+00> : vector<40x128xf32>
    %119 = tpu.matmul %118, %1, %cst_43 {dimension_numbers = #tpu.dot_dimension_numbers<[1], [0], [0], [1], [0, 0, 1, 1], [], []>} : vector<40x128xf32>, vector<128x128xf32>, vector<40x128xf32> -> vector<40x128xf32>
    %120 = arith.addf %116, %119 : vector<40x128xf32>
    %121 = vector.broadcast %3 : vector<40x1xf32> to vector<40x128xf32>
    %122 = arith.addf %120, %121 : vector<40x128xf32>
    %cst_44 = arith.constant dense<0xFF800000> : vector<128xf32>
    %123 = vector.multi_reduction <maximumf>, %122, %cst_44 [0] : vector<40x128xf32> to vector<128xf32>
    %124 = vector.shape_cast %123 : vector<128xf32> to vector<1x128xf32>
    %125 = vector.broadcast %124 : vector<1x128xf32> to vector<40x128xf32>
    %126 = arith.subf %122, %125 : vector<40x128xf32>
    %127 = math.exp %126 : vector<40x128xf32>
    %cst_45 = arith.constant dense<0.000000e+00> : vector<128xf32>
    %128 = vector.multi_reduction <add>, %127, %cst_45 [0] : vector<40x128xf32> to vector<128xf32>
    %129 = vector.shape_cast %128 : vector<128xf32> to vector<1x128xf32>
    %130 = tpu.reciprocal %129 {approx = true} : vector<1x128xf32> -> vector<1x128xf32>
    %131 = vector.broadcast %130 : vector<1x128xf32> to vector<40x128xf32>
    %132 = arith.mulf %127, %131 : vector<40x128xf32>
    %133 = arith.mulf %132, %99 : vector<40x128xf32>
    %cst_46 = arith.constant dense<0.000000e+00> : vector<128xf32>
    %134 = vector.multi_reduction <add>, %133, %cst_46 [0] : vector<40x128xf32> to vector<128xf32>
    %135 = vector.shape_cast %134 : vector<128xf32> to vector<1x128xf32>
    %136 = arith.addf %135, %2 : vector<1x128xf32>
    %137 = arith.mulf %136, %136 : vector<1x128xf32>
    %cst_47 = arith.constant dense<0.000000e+00> : vector<1x128xf32>
    %138 = tpu.matmul %137, %1, %cst_47 {dimension_numbers = #tpu.dot_dimension_numbers<[1], [0], [0], [1], [0, 0, 1, 1], [], []>} : vector<1x128xf32>, vector<128x128xf32>, vector<1x128xf32> -> vector<1x128xf32>
    %cst_48 = arith.constant 9.99999996E-13 : f32
    %139 = vector.broadcast %cst_48 : f32 to vector<1x128xf32>
    %140 = arith.addf %138, %139 : vector<1x128xf32>
    %141 = math.rsqrt %140 : vector<1x128xf32>
    %142 = arith.mulf %138, %141 : vector<1x128xf32>
    %cst_49 = arith.constant 1.000000e+00 : f32
    %143 = vector.broadcast %cst_49 : f32 to vector<1x128xf32>
    %144 = arith.addf %143, %138 : vector<1x128xf32>
    %145 = tpu.reciprocal %144 {approx = true} : vector<1x128xf32> -> vector<1x128xf32>
    %146 = arith.mulf %142, %145 : vector<1x128xf32>
    %147 = arith.mulf %136, %146 : vector<1x128xf32>
    %148 = vector.broadcast %147 : vector<1x128xf32> to vector<40x128xf32>
    %149 = arith.mulf %99, %148 : vector<40x128xf32>
    %cst_50 = arith.constant dense<0.000000e+00> : vector<40x128xf32>
    %150 = tpu.matmul %149, %1, %cst_50 {dimension_numbers = #tpu.dot_dimension_numbers<[1], [0], [0], [1], [0, 0, 1, 1], [], []>} : vector<40x128xf32>, vector<128x128xf32>, vector<40x128xf32> -> vector<40x128xf32>
    %151 = arith.addf %120, %150 : vector<40x128xf32>
    %152 = vector.broadcast %3 : vector<40x1xf32> to vector<40x128xf32>
    %153 = arith.addf %151, %152 : vector<40x128xf32>
    %cst_51 = arith.constant dense<0xFF800000> : vector<128xf32>
    %154 = vector.multi_reduction <maximumf>, %153, %cst_51 [0] : vector<40x128xf32> to vector<128xf32>
    %155 = vector.shape_cast %154 : vector<128xf32> to vector<1x128xf32>
    %156 = vector.broadcast %155 : vector<1x128xf32> to vector<40x128xf32>
    %157 = arith.subf %153, %156 : vector<40x128xf32>
    %158 = math.exp %157 : vector<40x128xf32>
    %cst_52 = arith.constant dense<0.000000e+00> : vector<128xf32>
    %159 = vector.multi_reduction <add>, %158, %cst_52 [0] : vector<40x128xf32> to vector<128xf32>
    %160 = vector.shape_cast %159 : vector<128xf32> to vector<1x128xf32>
    %161 = tpu.reciprocal %160 {approx = true} : vector<1x128xf32> -> vector<1x128xf32>
    %162 = vector.broadcast %161 : vector<1x128xf32> to vector<40x128xf32>
    %163 = arith.mulf %158, %162 : vector<40x128xf32>
    %164 = arith.mulf %163, %99 : vector<40x128xf32>
    %cst_53 = arith.constant dense<0.000000e+00> : vector<128xf32>
    %165 = vector.multi_reduction <add>, %164, %cst_53 [0] : vector<40x128xf32> to vector<128xf32>
    %166 = vector.shape_cast %165 : vector<128xf32> to vector<1x128xf32>
    %167 = arith.addf %166, %2 : vector<1x128xf32>
    %168 = arith.mulf %167, %167 : vector<1x128xf32>
    %cst_54 = arith.constant dense<0.000000e+00> : vector<1x128xf32>
    %169 = tpu.matmul %168, %1, %cst_54 {dimension_numbers = #tpu.dot_dimension_numbers<[1], [0], [0], [1], [0, 0, 1, 1], [], []>} : vector<1x128xf32>, vector<128x128xf32>, vector<1x128xf32> -> vector<1x128xf32>
    %cst_55 = arith.constant 9.99999996E-13 : f32
    %170 = vector.broadcast %cst_55 : f32 to vector<1x128xf32>
    %171 = arith.addf %169, %170 : vector<1x128xf32>
    %172 = math.rsqrt %171 : vector<1x128xf32>
    %173 = arith.mulf %169, %172 : vector<1x128xf32>
    %cst_56 = arith.constant 1.000000e+00 : f32
    %174 = vector.broadcast %cst_56 : f32 to vector<1x128xf32>
    %175 = arith.addf %174, %169 : vector<1x128xf32>
    %176 = tpu.reciprocal %175 {approx = true} : vector<1x128xf32> -> vector<1x128xf32>
    %177 = arith.mulf %173, %176 : vector<1x128xf32>
    %178 = arith.mulf %167, %177 : vector<1x128xf32>
    %c1_i32 = arith.constant 1 : i32
    %179 = vector.broadcast %c1_i32 : i32 to vector<2x1xi32>
    %180 = arith.cmpi eq, %4, %179 : vector<2x1xi32>
    %cst_57 = arith.constant 0.000000e+00 : f32
    %181 = vector.shape_cast %180 : vector<2x1xi1> to vector<2x1xi1>
    %182 = vector.broadcast %181 : vector<2x1xi1> to vector<2x128xi1>
    %183 = vector.shape_cast %178 : vector<1x128xf32> to vector<1x128xf32>
    %184 = vector.broadcast %183 : vector<1x128xf32> to vector<2x128xf32>
    %185 = vector.broadcast %cst_57 : f32 to vector<2x128xf32>
    %186 = arith.select %182, %184, %185 : vector<2x128xi1>, vector<2x128xf32>
    %187 = arith.addf %96, %186 : vector<2x128xf32>
    %c0_58 = arith.constant 0 : index
    %c0_59 = arith.constant 0 : index
    %c0_60 = arith.constant 0 : index
    %188 = vector.load %arg6[%c0_58, %c0_59, %c0_60] : memref<1x2x128xf32, #tpu.memory_space<vmem>>, vector<1x2x128xf32>
    %189 = vector.shape_cast %188 : vector<1x2x128xf32> to vector<2x128xf32>
    %190 = vector.shape_cast %187 : vector<2x128xf32> to vector<1x2x128xf32>
    tpu.vector_store %arg6[%c0_58, %c0_59, %c0_60], %190 {strides = array<i32>} : memref<1x2x128xf32, #tpu.memory_space<vmem>>, vector<1x2x128xf32>,
    return
  }
  func.func @transform_0(%arg0: i32) -> (i32, i32, i32, i32) {
    %c0_i32 = arith.constant 0 : i32
    %c0_i32_0 = arith.constant 0 : i32
    %c0_i32_1 = arith.constant 0 : i32
    %c0_i32_2 = arith.constant 0 : i32
    return %arg0, %c0_i32, %c0_i32_0, %c0_i32_1 : i32, i32, i32, i32
  }
  func.func @transform_1(%arg0: i32) -> (i32, i32) {
    %c0_i32 = arith.constant 0 : i32
    %c0_i32_0 = arith.constant 0 : i32
    %c0_i32_1 = arith.constant 0 : i32
    return %c0_i32, %c0_i32_0 : i32, i32
  }
  func.func @transform_2(%arg0: i32) -> (i32, i32) {
    %c0_i32 = arith.constant 0 : i32
    %c0_i32_0 = arith.constant 0 : i32
    %c0_i32_1 = arith.constant 0 : i32
    return %c0_i32, %c0_i32_0 : i32, i32
  }
  func.func @transform_3(%arg0: i32) -> (i32, i32) {
    %c0_i32 = arith.constant 0 : i32
    %c0_i32_0 = arith.constant 0 : i32
    %c0_i32_1 = arith.constant 0 : i32
    return %c0_i32, %c0_i32_0 : i32, i32
  }
  func.func @transform_4(%arg0: i32) -> (i32, i32) {
    %c0_i32 = arith.constant 0 : i32
    %c0_i32_0 = arith.constant 0 : i32
    %c0_i32_1 = arith.constant 0 : i32
    return %c0_i32, %c0_i32_0 : i32, i32
  }
  func.func @transform_5(%arg0: i32) -> (i32, i32, i32) {
    %c0_i32 = arith.constant 0 : i32
    %c0_i32_0 = arith.constant 0 : i32
    %c0_i32_1 = arith.constant 0 : i32
    return %arg0, %c0_i32, %c0_i32_0 : i32, i32, i32
  }
}

</mosaic_0001>

<llo_original>
// kernel: tpu_custom_call.1
$region0: #{tpu_custom_call.1}
  #allocation0 [shape = 'u32[]', space=smem, size = 0x4, offset = 0x4, fixed_abs, tag = 'smem constant byte address 0x4 - core index']
  #allocation1 [shape = 'u32[72,128]{1,0:T(1,128)}', space=vmem, size = 0x9000, scoped, tag = 'internal scratch']
  %s0 = inlined_call_operand.hbm [shape: f32[9,2,40,288], index: 0, kind: input, shape index: {}]
  %s1 = inlined_call_operand.hbm [shape: f32[288,128], index: 1, kind: input, shape index: {}]
  %s2 = inlined_call_operand.hbm [shape: f32[1,128], index: 2, kind: input, shape index: {}]
  %s3 = inlined_call_operand.hbm [shape: f32[128,128], index: 3, kind: input, shape index: {}]
  %s4 = inlined_call_operand.vmem [shape: f32[40,1], index: 4, kind: input, shape index: {}]
  %s5 = inlined_call_operand.hbm [shape: f32[9,2,128], index: 5, kind: output, shape index: {}]
  %s6 = sld [smem:[#allocation0]]
  $region69: #{tpu_custom_call.1} parent=0
    _
  %s8 = ssub.s32 1, %s6
  %s9 = scalar_select 0, %s8, %s6
  $region1: #{tpu_custom_call.1} parent=0
    #allocation2 [shape = 'u8[245760]{0}', space=vmem, size = 0x3c000, scoped, tag = 'input window, operand 0']
    #allocation3 [shape = 's32[2]{0}', space=sflag, size = 0x8, scoped, tag = 'scoped memory for tpu_custom_call.1']
    #allocation4 [shape = 's32[2]{0}', space=sflag, size = 0x8, scoped, tag = 'scoped memory for tpu_custom_call.1']
    #allocation5 [shape = 'u8[147456]{0}', space=vmem, size = 0x24000, scoped, tag = 'input window, operand 1, single buffered']
    #allocation6 [shape = 's32[1]{0}', space=sflag, size = 0x4, scoped, tag = 'scoped memory for tpu_custom_call.1']
    #allocation7 [shape = 'u8[512]{0}', space=vmem, size = 0x400, scoped, tag = 'input window, operand 2, single buffered']
    #allocation8 [shape = 'u8[65536]{0}', space=vmem, size = 0x10000, scoped, tag = 'input window, operand 3, single buffered']
    #allocation9 [shape = 's32[1]{0}', space=sflag, size = 0x4, scoped, tag = 'scoped memory for tpu_custom_call.1']
    #allocation10 [shape = 'u8[2048]{0}', space=vmem, size = 0x800, scoped, tag = 'output window, operand 0']
    %10 = vsyncpa [#allocation3], 0
    %s11 = scalar_lea.sflag [#allocation3], 1
    %12 = vsyncpa %s11, 0
    %13 = vsyncpa [#allocation6], 0
    %14 = vsyncpa [#allocation9], 0
    %15 = vsyncpa [#allocation4], 0
    %s16 = scalar_lea.sflag [#allocation4], 1
    %17 = vsyncpa %s16, 0
    loop: start=0, step=1, limit=11
    $region2: #{tpu_custom_call.1} parent=1 // loop_pre_header
      _
    $region3: #{tpu_custom_call.1} parent=1 // loop_header
      %s19 = sphi 0, %s23
      %p20 = scmp.ge.s32.totalorder %s19, 11
      %s29 = sphi 0, %s31
      %s32 = sphi 0, %s29
      %s33 = sphi 0, %s32
      %s49 = sphi 0, %s33
      %s53 = sphi 0, %s53
      %s55 = sphi 0, %s53
      %s56 = sphi 0, %s55
      %s70 = sphi 0, %s56
      %s74 = sphi 0, %s74
      %s76 = sphi 0, %s74
      %s77 = sphi 0, %s76
      %s91 = sphi 0, %s77
      %s95 = sphi 0, %s95
      %s97 = sphi 0, %s95
      %s98 = sphi 0, %s97
      %s112 = sphi 0, %s98
      %s116 = sphi 0, %s116
      %s118 = sphi 0, %s116
      %s119 = sphi 0, %s118
      %s133 = sphi 0, %s119
      %s139 = sphi 0, %s141
      %s142 = sphi 0, %s139
      %s143 = sphi 0, %s142
      %s159 = sphi 0, %s143
    $region4: #{tpu_custom_call.1} parent=1 // loop_header_branch
      %22 = sbr.rel (%p20) target = $region8
    $region5: #{tpu_custom_call.1} parent=1 // loop_body
      %s24 = ssub.s32 %s19, 1
      %s25 = ssub.s32 %s19, 2
      %s26 = sadd.s32 %s19, 1
      %s27 = ssub.s32 %s19, %s26
      %p28 = scmp.eq.s32.totalorder %s27, 0
      %s30 = sadd.s32 %s29, 1
      %s31 = scalar_select %p28, %s29, %s30
      %p34 = pneg %p28
      %p35 = scmp.eq.s32.totalorder %s19, 8
      %p36 = por %p34, %p35
      %p37 = scmp.ne.s32.totalorder %s29, %s32
      %p38 = scmp.eq.s32.totalorder %s19, 0
      %p39 = por %p37, %p38
      %p40 = scmp.ne.s32.totalorder %s29, %s32
      %p41 = scmp.eq.s32.totalorder %s24, 8
      %p42 = por %p40, %p41
      %p43 = scmp.ne.s32.totalorder %s32, %s33
      %p44 = scmp.eq.s32.totalorder %s24, 0
      %p45 = por %p43, %p44
      %p46 = scmp.ne.s32.totalorder %s32, %s33
      %p47 = scmp.eq.s32.totalorder %s25, 8
      %p48 = por %p46, %p47
      %p50 = scmp.ne.s32.totalorder %s33, %s49
      %p51 = scmp.eq.s32.totalorder %s25, 0
      %p52 = por %p50, %p51
      %s54 = sadd.s32 %s53, 1
      %p57 = scmp.eq.s32.totalorder %s19, 8
      %p58 = scmp.ne.s32.totalorder %s53, %s55
      %p59 = scmp.eq.s32.totalorder %s19, 0
      %p60 = por %p58, %p59
      %p61 = scmp.ne.s32.totalorder %s53, %s55
      %p62 = scmp.eq.s32.totalorder %s24, 8
      %p63 = por %p61, %p62
      %p64 = scmp.ne.s32.totalorder %s55, %s56
      %p65 = scmp.eq.s32.totalorder %s24, 0
      %p66 = por %p64, %p65
      %p67 = scmp.ne.s32.totalorder %s55, %s56
      %p68 = scmp.eq.s32.totalorder %s25, 8
      %p69 = por %p67, %p68
      %p71 = scmp.ne.s32.totalorder %s56, %s70
      %p72 = scmp.eq.s32.totalorder %s25, 0
      %p73 = por %p71, %p72
      %s75 = sadd.s32 %s74, 1
      %p78 = scmp.eq.s32.totalorder %s19, 8
      %p79 = scmp.ne.s32.totalorder %s74, %s76
      %p80 = scmp.eq.s32.totalorder %s19, 0
      %p81 = por %p79, %p80
      %p82 = scmp.ne.s32.totalorder %s74, %s76
      %p83 = scmp.eq.s32.totalorder %s24, 8
      %p84 = por %p82, %p83
      %p85 = scmp.ne.s32.totalorder %s76, %s77
      %p86 = scmp.eq.s32.totalorder %s24, 0
      %p87 = por %p85, %p86
      %p88 = scmp.ne.s32.totalorder %s76, %s77
      %p89 = scmp.eq.s32.totalorder %s25, 8
      %p90 = por %p88, %p89
      %p92 = scmp.ne.s32.totalorder %s77, %s91
      %p93 = scmp.eq.s32.totalorder %s25, 0
      %p94 = por %p92, %p93
      %s96 = sadd.s32 %s95, 1
      %p99 = scmp.eq.s32.totalorder %s19, 8
      %p100 = scmp.ne.s32.totalorder %s95, %s97
      %p101 = scmp.eq.s32.totalorder %s19, 0
      %p102 = por %p100, %p101
      %p103 = scmp.ne.s32.totalorder %s95, %s97
      %p104 = scmp.eq.s32.totalorder %s24, 8
      %p105 = por %p103, %p104
      %p106 = scmp.ne.s32.totalorder %s97, %s98
      %p107 = scmp.eq.s32.totalorder %s24, 0
      %p108 = por %p106, %p107
      %p109 = scmp.ne.s32.totalorder %s97, %s98
      %p110 = scmp.eq.s32.totalorder %s25, 8
      %p111 = por %p109, %p110
      %p113 = scmp.ne.s32.totalorder %s98, %s112
      %p114 = scmp.eq.s32.totalorder %s25, 0
      %p115 = por %p113, %p114
      %s117 = sadd.s32 %s116, 1
      %p120 = scmp.eq.s32.totalorder %s19, 8
      %p121 = scmp.ne.s32.totalorder %s116, %s118
      %p122 = scmp.eq.s32.totalorder %s19, 0
      %p123 = por %p121, %p122
      %p124 = scmp.ne.s32.totalorder %s116, %s118
      %p125 = scmp.eq.s32.totalorder %s24, 8
      %p126 = por %p124, %p125
      %p127 = scmp.ne.s32.totalorder %s118, %s119
      %p128 = scmp.eq.s32.totalorder %s24, 0
      %p129 = por %p127, %p128
      %p130 = scmp.ne.s32.totalorder %s118, %s119
      %p131 = scmp.eq.s32.totalorder %s25, 8
      %p132 = por %p130, %p131
      %p134 = scmp.ne.s32.totalorder %s119, %s133
      %p135 = scmp.eq.s32.totalorder %s25, 0
      %p136 = por %p134, %p135
      %s137 = ssub.s32 %s19, %s26
      %p138 = scmp.eq.s32.totalorder %s137, 0
      %s140 = sadd.s32 %s139, 1
      %s141 = scalar_select %p138, %s139, %s140
      %p144 = pneg %p138
      %p145 = scmp.eq.s32.totalorder %s19, 8
      %p146 = por %p144, %p145
      %p147 = scmp.ne.s32.totalorder %s139, %s142
      %p148 = scmp.eq.s32.totalorder %s19, 0
      %p149 = por %p147, %p148
      %p150 = scmp.ne.s32.totalorder %s139, %s142
      %p151 = scmp.eq.s32.totalorder %s24, 8
      %p152 = por %p150, %p151
      %p153 = scmp.ne.s32.totalorder %s142, %s143
      %p154 = scmp.eq.s32.totalorder %s24, 0
      %p155 = por %p153, %p154
      %p156 = scmp.ne.s32.totalorder %s142, %s143
      %p157 = scmp.eq.s32.totalorder %s25, 8
      %p158 = por %p156, %p157
      %p160 = scmp.ne.s32.totalorder %s143, %s159
      %p161 = scmp.eq.s32.totalorder %s25, 0
      %p162 = por %p160, %p161
      %p163 = scmp.le.s32.totalorder 1, %s19
      %p164 = scmp.lt.s32.totalorder %s19, 10
      %p165 = pnand %p163, %p164
      %p166 = pneg %p165
      // Predicated region
      $region9: #{tpu_custom_call.1} parent=5 // pred_check
        _
      $region10: #{tpu_custom_call.1} parent=5 // pred_check_branch
        %168 = sbr.rel (%p165) target = $region12
      $region11: #{tpu_custom_call.1} parent=5 // pred_region
        %s169 = ssub.s32 %s19, 1
        // Predicated region
        $region13: #{tpu_custom_call.1} parent=11 // pred_check
          %p170 = pneg %p66
        $region14: #{tpu_custom_call.1} parent=11 // pred_check_branch
          %172 = sbr.rel (%p170) target = $region16
        $region15: #{tpu_custom_call.1} parent=11 // pred_region
          %174 = vsyncadd [#allocation6], 0
          %s175 = sshll.u32 %s1, 4
          %s176 = int_to_ptr.hbm [resolvable:$true] %s175
          %s177 = sshll.u32 [#allocation5], 4
          %s178 = int_to_ptr.vmem [resolvable:$true] %s177
          %183 = dma.hbm_to_vmem [thread:$0]  %s176, 4608, %s178, [#allocation6], 128, 128, 8
        $region16: #{tpu_custom_call.1} parent=11 // pred_fallthru
          _
        // Predicated region
        $region17: #{tpu_custom_call.1} parent=11 // pred_check
          %p184 = pneg %p87
        $region18: #{tpu_custom_call.1} parent=11 // pred_check_branch
          %186 = sbr.rel (%p184) target = $region20
        $region19: #{tpu_custom_call.1} parent=11 // pred_region
          %188 = vsyncadd [#allocation6], 0
          %s190 = sshll.u32 %s2, 4
          %s191 = int_to_ptr.hbm [resolvable:$true] %s190
          %s192 = sshll.u32 [#allocation7], 4
          %s193 = int_to_ptr.vmem [resolvable:$true] %s192
          %195 = dma.hbm_to_vmem [thread:$0]  %s191, 16, %s193, [#allocation6]
        $region20: #{tpu_custom_call.1} parent=11 // pred_fallthru
          _
        // Predicated region
        $region21: #{tpu_custom_call.1} parent=11 // pred_check
          %p196 = pneg %p108
        $region22: #{tpu_custom_call.1} parent=11 // pred_check_branch
          %198 = sbr.rel (%p196) target = $region24
        $region23: #{tpu_custom_call.1} parent=11 // pred_region
          %200 = vsyncadd [#allocation9], 0
          %s201 = sshll.u32 %s3, 4
          %s202 = int_to_ptr.hbm [resolvable:$true] %s201
          %s203 = sshll.u32 [#allocation8], 4
          %s204 = int_to_ptr.vmem [resolvable:$true] %s203
          %209 = dma.hbm_to_vmem [thread:$0]  %s202, 2048, %s204, [#allocation9], 128, 128, 8
        $region24: #{tpu_custom_call.1} parent=11 // pred_fallthru
          _
        // Predicated region
        $region25: #{tpu_custom_call.1} parent=11 // pred_check
          %p210 = pneg %p129
        $region26: #{tpu_custom_call.1} parent=11 // pred_check_branch
          %212 = sbr.rel (%p210) target = $region28
        $region27: #{tpu_custom_call.1} parent=11 // pred_region
          _
        $region28: #{tpu_custom_call.1} parent=11 // pred_fallthru
          _
      $region12: #{tpu_custom_call.1} parent=5 // pred_fallthru
        _
      %p213 = scmp.lt.s32.totalorder %s19, 9
      // Predicated region
      $region29: #{tpu_custom_call.1} parent=5 // pred_check
        %p214 = pneg %p213
      $region30: #{tpu_custom_call.1} parent=5 // pred_check_branch
        %216 = sbr.rel (%p214) target = $region32
      $region31: #{tpu_custom_call.1} parent=5 // pred_region
        // Predicated region
        $region33: #{tpu_custom_call.1} parent=31 // pred_check
          %p217 = pneg %p39
        $region34: #{tpu_custom_call.1} parent=31 // pred_check_branch
          %219 = sbr.rel (%p217) target = $region36
        $region35: #{tpu_custom_call.1} parent=31 // pred_region
          %s220 = sand.u32 %s29, 1
          %s221 = scalar_lea.sflag [#allocation3], %s220
          %s222 = sand.u32 %s29, 1
          %s223 = smul.addr %s222, 240
          %s224 = scalar_lea.vmem [#allocation2], %s223
          %226 = vsyncadd %s221, 0
          %s227 = smul.addr %s19, 30
          %s228 = smul.addr %s227, 8
          %s229 = scalar_lea.hbm %s0, %s228
          %s230 = sshll.u32 %s229, 4
          %s231 = int_to_ptr.hbm [resolvable:$true] %s230
          %s232 = sshll.u32 %s224, 4
          %s233 = int_to_ptr.vmem [resolvable:$true] %s232
          %238 = dma.hbm_to_vmem [thread:$0]  %s231, 3840, %s233, %s221, 384, 384, 24
        $region36: #{tpu_custom_call.1} parent=31 // pred_fallthru
          _
      $region32: #{tpu_custom_call.1} parent=5 // pred_fallthru
        _
      %p239 = scmp.le.s32.totalorder 1, %s19
      %p240 = scmp.lt.s32.totalorder %s19, 10
      %p241 = pnand %p239, %p240
      %p242 = pneg %p241
      // Predicated region
      $region37: #{tpu_custom_call.1} parent=5 // pred_check
        _
      $region38: #{tpu_custom_call.1} parent=5 // pred_check_branch
        %244 = sbr.rel (%p241) target = $region40
      $region39: #{tpu_custom_call.1} parent=5 // pred_region
        %s245 = ssub.s32 %s19, 1
        %s246 = sand.u32 %s32, 1
        %s247 = scalar_lea.sflag [#allocation3], %s246
        %s248 = sand.u32 %s32, 1
        %s249 = smul.addr %s248, 240
        %s250 = scalar_lea.vmem [#allocation2], %s249
        // Predicated region
        $region41: #{tpu_custom_call.1} parent=39 // pred_check
          %p251 = pneg %p45
        $region42: #{tpu_custom_call.1} parent=39 // pred_check_branch
          %253 = sbr.rel (%p251) target = $region44
        $region43: #{tpu_custom_call.1} parent=39 // pred_region
          %255 = dma.done %s247, 3840
        $region44: #{tpu_custom_call.1} parent=39 // pred_fallthru
          _
        // Predicated region
        $region45: #{tpu_custom_call.1} parent=39 // pred_check
          %p256 = pneg %p66
        $region46: #{tpu_custom_call.1} parent=39 // pred_check_branch
          %258 = sbr.rel (%p256) target = $region48
        $region47: #{tpu_custom_call.1} parent=39 // pred_region
          %260 = dma.done [#allocation6], 4608
        $region48: #{tpu_custom_call.1} parent=39 // pred_fallthru
          _
        // Predicated region
        $region49: #{tpu_custom_call.1} parent=39 // pred_check
          %p261 = pneg %p87
        $region50: #{tpu_custom_call.1} parent=39 // pred_check_branch
          %263 = sbr.rel (%p261) target = $region52
        $region51: #{tpu_custom_call.1} parent=39 // pred_region
          %265 = dma.done [#allocation6], 16
        $region52: #{tpu_custom_call.1} parent=39 // pred_fallthru
          _
        // Predicated region
        $region53: #{tpu_custom_call.1} parent=39 // pred_check
          %p266 = pneg %p108
        $region54: #{tpu_custom_call.1} parent=39 // pred_check_branch
          %268 = sbr.rel (%p266) target = $region56
        $region55: #{tpu_custom_call.1} parent=39 // pred_region
          %270 = dma.done [#allocation9], 2048
        $region56: #{tpu_custom_call.1} parent=39 // pred_fallthru
          _
        %s271 = sand.u32 %s32, 1
        %s272 = scalar_lea.sflag [#allocation3], %s271
        %s273 = sand.u32 %s32, 1
        %s274 = smul.addr %s273, 240
        %s275 = scalar_lea.vmem [#allocation2], %s274
        %p276 = pneg %p45
        %p277 = pneg %p42
        %p278 = pneg %p66
        %p279 = pneg %p63
        %p280 = pneg %p87
        %p281 = pneg %p84
        %p282 = pneg %p108
        %p283 = pneg %p105
        %p284 = pneg %p129
        %p285 = pneg %p126
        %p286 = pneg %p155
        %p287 = pneg %p152
        %s288 = sand.u32 %s142, 1
        %s289 = scalar_lea.sflag [#allocation4], %s288
        %s290 = sand.u32 %s142, 1
        %s291 = smul.addr %s290, 2
        %s292 = scalar_lea.vmem [#allocation10], %s291
        %v293 = vld [vmem:[#allocation5] sm:$0xff]
        %v294 = vld [vmem:[#allocation5 + $0x8] sm:$0xff]
        %v295 = vld [vmem:[#allocation5 + $0x10] sm:$0xff]
        %v296 = vld [vmem:[#allocation5 + $0x18] sm:$0xff]
        %v297 = vld [vmem:[#allocation5 + $0x20] sm:$0xff]
        %v298 = vld [vmem:[#allocation5 + $0x28] sm:$0xff]
        %v299 = vld [vmem:[#allocation5 + $0x30] sm:$0xff]
        %v300 = vld [vmem:[#allocation5 + $0x38] sm:$0xff]
        %v301 = vld [vmem:[#allocation5 + $0x40] sm:$0xff]
        %v302 = vld [vmem:[#allocation5 + $0x48] sm:$0xff]
        %v303 = vld [vmem:[#allocation5 + $0x50] sm:$0xff]
        %v304 = vld [vmem:[#allocation5 + $0x58] sm:$0xff]
        %v305 = vld [vmem:[#allocation5 + $0x60] sm:$0xff]
        %v306 = vld [vmem:[#allocation5 + $0x68] sm:$0xff]
        %v307 = vld [vmem:[#allocation5 + $0x70] sm:$0xff]
        %v308 = vld [vmem:[#allocation5 + $0x78] sm:$0xff]
        %v309 = vld [vmem:[#allocation5 + $0x80] sm:$0xff]
        %v310 = vld [vmem:[#allocation5 + $0x88] sm:$0xff]
        %v311 = vld [vmem:[#allocation5 + $0x90] sm:$0xff]
        %v312 = vld [vmem:[#allocation5 + $0x98] sm:$0xff]
        %v313 = vld [vmem:[#allocation5 + $0xa0] sm:$0xff]
        %v314 = vld [vmem:[#allocation5 + $0xa8] sm:$0xff]
        %v315 = vld [vmem:[#allocation5 + $0xb0] sm:$0xff]
        %v316 = vld [vmem:[#allocation5 + $0xb8] sm:$0xff]
        %v317 = vld [vmem:[#allocation5 + $0xc0] sm:$0xff]
        %v318 = vld [vmem:[#allocation5 + $0xc8] sm:$0xff]
        %v319 = vld [vmem:[#allocation5 + $0xd0] sm:$0xff]
        %v320 = vld [vmem:[#allocation5 + $0xd8] sm:$0xff]
        %v321 = vld [vmem:[#allocation5 + $0xe0] sm:$0xff]
        %v322 = vld [vmem:[#allocation5 + $0xe8] sm:$0xff]
        %v323 = vld [vmem:[#allocation5 + $0xf0] sm:$0xff]
        %v324 = vld [vmem:[#allocation5 + $0xf8] sm:$0xff]
        %v325 = vld [vmem:[#allocation5 + $0x100] sm:$0xff]
        %v326 = vld [vmem:[#allocation5 + $0x108] sm:$0xff]
        %v327 = vld [vmem:[#allocation5 + $0x110] sm:$0xff]
        %v328 = vld [vmem:[#allocation5 + $0x118] sm:$0xff]
        %v329 = vld [vmem:[#allocation8] sm:$0xff]
        %v330 = vld [vmem:[#allocation8 + $0x8] sm:$0xff]
        %v331 = vld [vmem:[#allocation8 + $0x10] sm:$0xff]
        %v332 = vld [vmem:[#allocation8 + $0x18] sm:$0xff]
        %v333 = vld [vmem:[#allocation8 + $0x20] sm:$0xff]
        %v334 = vld [vmem:[#allocation8 + $0x28] sm:$0xff]
        %v335 = vld [vmem:[#allocation8 + $0x30] sm:$0xff]
        %v336 = vld [vmem:[#allocation8 + $0x38] sm:$0xff]
        %v337 = vld [vmem:[#allocation8 + $0x40] sm:$0xff]
        %v338 = vld [vmem:[#allocation8 + $0x48] sm:$0xff]
        %v339 = vld [vmem:[#allocation8 + $0x50] sm:$0xff]
        %v340 = vld [vmem:[#allocation8 + $0x58] sm:$0xff]
        %v341 = vld [vmem:[#allocation8 + $0x60] sm:$0xff]
        %v342 = vld [vmem:[#allocation8 + $0x68] sm:$0xff]
        %v343 = vld [vmem:[#allocation8 + $0x70] sm:$0xff]
        %v344 = vld [vmem:[#allocation8 + $0x78] sm:$0xff]
        %v345 = vld [vmem:[#allocation7] sm:$0x1]
        %v346 = vld [vmem:[%s4] sm:$0xff]
        %v347 = vld [vmem:[%s4 + $0x8] sm:$0xff]
        %v348 = vld [vmem:[%s4 + $0x10] sm:$0xff]
        %v349 = vld [vmem:[%s4 + $0x18] sm:$0xff]
        %v350 = vld [vmem:[%s4 + $0x20] sm:$0xff]
        %v351 = vlaneseq
        %v352 = vshrl.u32 %v351, 7
        %v353 = vld [vmem:[%s250] sm:$0xff]
        %v354 = vld [vmem:[%s250 + $0x8] sm:$0xff]
        %v355 = vld [vmem:[%s250 + $0x10] sm:$0xff]
        %v356 = vld [vmem:[%s250 + $0x18] sm:$0xff]
        %v357 = vld [vmem:[%s250 + $0x20] sm:$0xff]
        %v358 = vld [vmem:[%s250 + $0x28] sm:$0xff]
        %v359 = vld [vmem:[%s250 + $0x30] sm:$0xff]
        %v360 = vld [vmem:[%s250 + $0x38] sm:$0xff]
        %v361 = vld [vmem:[%s250 + $0x40] sm:$0xff]
        %v362 = vld [vmem:[%s250 + $0x48] sm:$0xff]
        %v363 = vld [vmem:[%s250 + $0x50] sm:$0xff]
        %v364 = vld [vmem:[%s250 + $0x58] sm:$0xff]
        %v365 = vld [vmem:[%s250 + $0x60] sm:$0xff]
        %v366 = vld [vmem:[%s250 + $0x68] sm:$0xff]
        %v367 = vld [vmem:[%s250 + $0x70] sm:$0xff]
        %vm368 = vcmask 261120
        %v370 = vsel %vm368, %v355, 0
        %v373 = vsel %vm368, %v358, 0
        %v376 = vsel %vm368, %v361, 0
        %v379 = vsel %vm368, %v364, 0
        %v382 = vsel %vm368, %v367, 0
        %384 = vmatpush.msra.mxu0 %v308
        %385 = vmatpush.msra.mxu0 %v307
        %386 = vmatpush.msra.mxu0 %v306
        %387 = vmatpush.msra.mxu0 %v305
        %388 = vmatpush.msra.mxu0 %v304
        %389 = vmatpush.msra.mxu0 %v303
        %390 = vmatpush.msra.mxu0 %v302
        %391 = vmatpush.msra.mxu0 %v301
        %392 = vmatpush.msra.mxu0 %v300
        %393 = vmatpush.msra.mxu0 %v299
        %394 = vmatpush.msra.mxu0 %v298
        %395 = vmatpush.msra.mxu0 %v297
        %396 = vmatpush.msra.mxu0 %v296
        %397 = vmatpush.msra.mxu0 %v295
        %398 = vmatpush.msra.mxu0 %v294
        %399 = vmatpush.msra.mxu0 %v293
        %400 = vmatmul.f32.gmra.mxu0 %v353
        %v401 = vpop.f32.mrf.mxu0
        %v402 = vadd.f32 0.0, %v401
        %403 = vmatmul.f32.gmra.mxu0 %v356
        %v404 = vpop.f32.mrf.mxu0
        %v405 = vadd.f32 0.0, %v404
        %406 = vmatmul.f32.gmra.mxu0 %v359
        %v407 = vpop.f32.mrf.mxu0
        %v408 = vadd.f32 0.0, %v407
        %409 = vmatmul.f32.gmra.mxu0 %v362
        %v410 = vpop.f32.mrf.mxu0
        %v411 = vadd.f32 0.0, %v410
        %412 = vmatmul.f32.gmra.mxu0 %v365
        %v413 = vpop.f32.mrf.mxu0
        %v414 = vadd.f32 0.0, %v413
        %415 = vdwg.mxu0
        %416 = vmatpush.msra.mxu0 %v324
        %417 = vmatpush.msra.mxu0 %v323
        %418 = vmatpush.msra.mxu0 %v322
        %419 = vmatpush.msra.mxu0 %v321
        %420 = vmatpush.msra.mxu0 %v320
        %421 = vmatpush.msra.mxu0 %v319
        %422 = vmatpush.msra.mxu0 %v318
        %423 = vmatpush.msra.mxu0 %v317
        %424 = vmatpush.msra.mxu0 %v316
        %425 = vmatpush.msra.mxu0 %v315
        %426 = vmatpush.msra.mxu0 %v314
        %427 = vmatpush.msra.mxu0 %v313
        %428 = vmatpush.msra.mxu0 %v312
        %429 = vmatpush.msra.mxu0 %v311
        %430 = vmatpush.msra.mxu0 %v310
        %431 = vmatpush.msra.mxu0 %v309
        %432 = vmatmul.f32.gmra.mxu0 %v354
        %v433 = vpop.f32.mrf.mxu0
        %v434 = vadd.f32 %v402, %v433
        %435 = vmatmul.f32.gmra.mxu0 %v357
        %v436 = vpop.f32.mrf.mxu0
        %v437 = vadd.f32 %v405, %v436
        %438 = vmatmul.f32.gmra.mxu0 %v360
        %v439 = vpop.f32.mrf.mxu0
        %v440 = vadd.f32 %v408, %v439
        %441 = vmatmul.f32.gmra.mxu0 %v363
        %v442 = vpop.f32.mrf.mxu0
        %v443 = vadd.f32 %v411, %v442
        %444 = vmatmul.f32.gmra.mxu0 %v366
        %v445 = vpop.f32.mrf.mxu0
        %v446 = vadd.f32 %v414, %v445
        %447 = vdwg.mxu0
        %448 = vmatpush.msra.mxu0 0.0
        %449 = vmatpush.msra.mxu0 0.0
        %450 = vmatpush.msra.mxu0 0.0
        %451 = vmatpush.msra.mxu0 0.0
        %452 = vmatpush.msra.mxu0 0.0
        %453 = vmatpush.msra.mxu0 0.0
        %454 = vmatpush.msra.mxu0 0.0
        %455 = vmatpush.msra.mxu0 0.0
        %456 = vmatpush.msra.mxu0 0.0
        %457 = vmatpush.msra.mxu0 0.0
        %458 = vmatpush.msra.mxu0 0.0
        %459 = vmatpush.msra.mxu0 0.0
        %460 = vmatpush.msra.mxu0 %v328
        %461 = vmatpush.msra.mxu0 %v327
        %462 = vmatpush.msra.mxu0 %v326
        %463 = vmatpush.msra.mxu0 %v325
        %464 = vmatmul.f32.gmra.mxu0 %v370
        %v465 = vpop.f32.mrf.mxu0
        %v466 = vadd.f32 %v434, %v465
        %467 = vmatmul.f32.gmra.mxu0 %v373
        %v468 = vpop.f32.mrf.mxu0
        %v469 = vadd.f32 %v437, %v468
        %470 = vmatmul.f32.gmra.mxu0 %v376
        %v471 = vpop.f32.mrf.mxu0
        %v472 = vadd.f32 %v440, %v471
        %473 = vmatmul.f32.gmra.mxu0 %v379
        %v474 = vpop.f32.mrf.mxu0
        %v475 = vadd.f32 %v443, %v474
        %476 = vmatmul.f32.gmra.mxu0 %v382
        %v477 = vpop.f32.mrf.mxu0
        %v478 = vadd.f32 %v446, %v477
        %479 = vdwg.mxu0
        %v480 = vadd.f32 %v466, %v469
        %v481 = vadd.f32 %v480, %v472
        %v482 = vadd.f32 %v481, %v475
        %v483 = vadd.f32 %v482, %v478
        %v484 = vrot.slane %v483, 4
        %v485 = vadd.f32 %v483, %v484
        %v486 = vrot.slane %v485, 2
        %v487 = vadd.f32 %v485, %v486
        %v488 = vrot.slane %v487, 1
        %v489 = vadd.f32 %v487, %v488
        %v490 = vmul.f32 %v489, 0.027777778
        %v491 = vadd.f32 %v490, %v345
        %v492 = vmul.f32 %v491, %v491
        %493 = vmatpush.msra.mxu0 %v344
        %494 = vmatpush.msra.mxu0 %v343
        %495 = vmatpush.msra.mxu0 %v342
        %496 = vmatpush.msra.mxu0 %v341
        %497 = vmatpush.msra.mxu0 %v340
        %498 = vmatpush.msra.mxu0 %v339
        %499 = vmatpush.msra.mxu0 %v338
        %500 = vmatpush.msra.mxu0 %v337
        %501 = vmatpush.msra.mxu0 %v336
        %502 = vmatpush.msra.mxu0 %v335
        %503 = vmatpush.msra.mxu0 %v334
        %504 = vmatpush.msra.mxu0 %v333
        %505 = vmatpush.msra.mxu0 %v332
        %506 = vmatpush.msra.mxu0 %v331
        %507 = vmatpush.msra.mxu0 %v330
        %508 = vmatpush.msra.mxu0 %v329
        %509 = vmatmul.f32.gmra.mxu0 %v492
        %v510 = vpop.f32.mrf.mxu0
        %v511 = vadd.f32 0.0, %v510
        %512 = vdwg.mxu0
        %v513 = vadd.f32 %v511, 1e-12
        %v514 = vrsqrt.pop %v513
        %v515 = vmul.f32 %v514, %v513
        %v516 = vmul.f32 %v515, %v514
        %v517 = vmul.f32 0.5, %v516
        %v518 = vsub.f32 1.5, %v517
        %v519 = vmul.f32 %v514, %v518
        %vm520 = vweird.f32 %v513
        %vm521 = vweird.f32 %v514
        %vm522 = vmor %vm520, %vm521
        %v523 = vsel %vm522, %v514, %v519
        %v524 = vmul.f32 %v511, %v523
        %v525 = vadd.f32 %v511, 1.0
        %v526 = vrcp.pop %v525
        %v527 = vmul.f32 %v524, %v526
        %v528 = vmul.f32 %v491, %v527
        %v529 = vperm.slane %v528, 0
        %v530 = vmul.f32 %v466, %v529
        %v531 = vmul.f32 %v469, %v529
        %v532 = vmul.f32 %v472, %v529
        %v533 = vmul.f32 %v475, %v529
        %v534 = vmul.f32 %v478, %v529
        %535 = vmatpush.msra.mxu0 %v344
        %536 = vmatpush.msra.mxu0 %v343
        %537 = vmatpush.msra.mxu0 %v342
        %538 = vmatpush.msra.mxu0 %v341
        %539 = vmatpush.msra.mxu0 %v340
        %540 = vmatpush.msra.mxu0 %v339
        %541 = vmatpush.msra.mxu0 %v338
        %542 = vmatpush.msra.mxu0 %v337
        %543 = vmatpush.msra.mxu0 %v336
        %544 = vmatpush.msra.mxu0 %v335
        %545 = vmatpush.msra.mxu0 %v334
        %546 = vmatpush.msra.mxu0 %v333
        %547 = vmatpush.msra.mxu0 %v332
        %548 = vmatpush.msra.mxu0 %v331
        %549 = vmatpush.msra.mxu0 %v330
        %550 = vmatpush.msra.mxu0 %v329
        %551 = vmatmul.f32.gmra.mxu0 %v530
        %v552 = vpop.f32.mrf.mxu0
        %v553 = vadd.f32 0.0, %v552
        %554 = vmatmul.f32.gmra.mxu0 %v531
        %v555 = vpop.f32.mrf.mxu0
        %v556 = vadd.f32 0.0, %v555
        %557 = vmatmul.f32.gmra.mxu0 %v532
        %v558 = vpop.f32.mrf.mxu0
        %v559 = vadd.f32 0.0, %v558
        %560 = vmatmul.f32.gmra.mxu0 %v533
        %v561 = vpop.f32.mrf.mxu0
        %v562 = vadd.f32 0.0, %v561
        %563 = vmatmul.f32.gmra.mxu0 %v534
        %v564 = vpop.f32.mrf.mxu0
        %v565 = vadd.f32 0.0, %v564
        %566 = vdwg.mxu0
        %568 = vset.pattern.permute.xlu0 0
        %569 = vperm.xlu0 %568, %v346
        %v570 = vpop.permute.xlu0 %569
        %573 = vset.pattern.permute.xlu0 0
        %574 = vperm.xlu0 %573, %v347
        %v575 = vpop.permute.xlu0 %574
        %578 = vset.pattern.permute.xlu0 0
        %579 = vperm.xlu0 %578, %v348
        %v580 = vpop.permute.xlu0 %579
        %583 = vset.pattern.permute.xlu0 0
        %584 = vperm.xlu0 %583, %v349
        %v585 = vpop.permute.xlu0 %584
        %588 = vset.pattern.permute.xlu0 0
        %589 = vperm.xlu0 %588, %v350
        %v590 = vpop.permute.xlu0 %589
        %v592 = vadd.f32 %v553, %v570
        %v593 = vadd.f32 %v556, %v575
        %v594 = vadd.f32 %v559, %v580
        %v595 = vadd.f32 %v562, %v585
        %v596 = vadd.f32 %v565, %v590
        %v597 = vmax.f32 %v592, %v596
        %v598 = vmax.f32 %v597, %v593
        %v599 = vmax.f32 %v594, %v595
        %v600 = vmax.f32 %v598, %v599
        %v601 = vrot.slane %v600, 4
        %v602 = vmax.f32 %v600, %v601
        %v603 = vrot.slane %v602, 2
        %v604 = vmax.f32 %v602, %v603
        %v605 = vrot.slane %v604, 1
        %v606 = vmax.f32 %v604, %v605
        %v607 = vsub.f32 %v592, %v606
        %v608 = vsub.f32 %v593, %v606
        %v609 = vsub.f32 %v594, %v606
        %v610 = vsub.f32 %v595, %v606
        %v611 = vsub.f32 %v596, %v606
        %v612 = vmul.f32 %v607, 1.442695
        %v613 = vpow.pop %v612
        %v614 = vmul.f32 %v608, 1.442695
        %v615 = vpow.pop %v614
        %v616 = vmul.f32 %v609, 1.442695
        %v617 = vpow.pop %v616
        %v618 = vmul.f32 %v610, 1.442695
        %v619 = vpow.pop %v618
        %v620 = vmul.f32 %v611, 1.442695
        %v621 = vpow.pop %v620
        %v622 = vadd.f32 %v613, %v615
        %v623 = vadd.f32 %v622, %v617
        %v624 = vadd.f32 %v623, %v619
        %v625 = vadd.f32 %v624, %v621
        %v626 = vrot.slane %v625, 4
        %v627 = vadd.f32 %v625, %v626
        %v628 = vrot.slane %v627, 2
        %v629 = vadd.f32 %v627, %v628
        %v630 = vrot.slane %v629, 1
        %v631 = vadd.f32 %v629, %v630
        %v632 = vrcp.pop %v631
        %v633 = vmul.f32 %v613, %v632
        %v634 = vmul.f32 %v615, %v632
        %v635 = vmul.f32 %v617, %v632
        %v636 = vmul.f32 %v619, %v632
        %v637 = vmul.f32 %v621, %v632
        %v638 = vmul.f32 %v633, %v466
        %v639 = vmul.f32 %v634, %v469
        %v640 = vmul.f32 %v635, %v472
        %v641 = vmul.f32 %v636, %v475
        %v642 = vmul.f32 %v637, %v478
        %v643 = vadd.f32 %v638, %v639
        %v644 = vadd.f32 %v643, %v640
        %v645 = vadd.f32 %v644, %v641
        %v646 = vadd.f32 %v645, %v642
        %v647 = vrot.slane %v646, 4
        %v648 = vadd.f32 %v646, %v647
        %v649 = vrot.slane %v648, 2
        %v650 = vadd.f32 %v648, %v649
        %v651 = vrot.slane %v650, 1
        %v652 = vadd.f32 %v650, %v651
        %v653 = vadd.f32 %v652, %v345
        %v654 = vmul.f32 %v653, %v653
        %655 = vmatpush.msra.mxu0 %v344
        %656 = vmatpush.msra.mxu0 %v343
        %657 = vmatpush.msra.mxu0 %v342
        %658 = vmatpush.msra.mxu0 %v341
        %659 = vmatpush.msra.mxu0 %v340
        %660 = vmatpush.msra.mxu0 %v339
        %661 = vmatpush.msra.mxu0 %v338
        %662 = vmatpush.msra.mxu0 %v337
        %663 = vmatpush.msra.mxu0 %v336
        %664 = vmatpush.msra.mxu0 %v335
        %665 = vmatpush.msra.mxu0 %v334
        %666 = vmatpush.msra.mxu0 %v333
        %667 = vmatpush.msra.mxu0 %v332
        %668 = vmatpush.msra.mxu0 %v331
        %669 = vmatpush.msra.mxu0 %v330
        %670 = vmatpush.msra.mxu0 %v329
        %671 = vmatmul.f32.gmra.mxu0 %v654
        %v672 = vpop.f32.mrf.mxu0
        %v673 = vadd.f32 0.0, %v672
        %674 = vdwg.mxu0
        %v675 = vadd.f32 %v673, 1e-12
        %v676 = vrsqrt.pop %v675
        %v677 = vmul.f32 %v676, %v675
        %v678 = vmul.f32 %v677, %v676
        %v679 = vmul.f32 0.5, %v678
        %v680 = vsub.f32 1.5, %v679
        %v681 = vmul.f32 %v676, %v680
        %vm682 = vweird.f32 %v675
        %vm683 = vweird.f32 %v676
        %vm684 = vmor %vm682, %vm683
        %v685 = vsel %vm684, %v676, %v681
        %v686 = vmul.f32 %v673, %v685
        %v687 = vadd.f32 %v673, 1.0
        %v688 = vrcp.pop %v687
        %v689 = vmul.f32 %v686, %v688
        %v690 = vmul.f32 %v653, %v689
        %v691 = vperm.slane %v690, 0
        %v692 = vmul.f32 %v466, %v691
        %v693 = vmul.f32 %v469, %v691
        %v694 = vmul.f32 %v472, %v691
        %v695 = vmul.f32 %v475, %v691
        %v696 = vmul.f32 %v478, %v691
        %697 = vmatpush.msra.mxu0 %v344
        %698 = vmatpush.msra.mxu0 %v343
        %699 = vmatpush.msra.mxu0 %v342
        %700 = vmatpush.msra.mxu0 %v341
        %701 = vmatpush.msra.mxu0 %v340
        %702 = vmatpush.msra.mxu0 %v339
        %703 = vmatpush.msra.mxu0 %v338
        %704 = vmatpush.msra.mxu0 %v337
        %705 = vmatpush.msra.mxu0 %v336
        %706 = vmatpush.msra.mxu0 %v335
        %707 = vmatpush.msra.mxu0 %v334
        %708 = vmatpush.msra.mxu0 %v333
        %709 = vmatpush.msra.mxu0 %v332
        %710 = vmatpush.msra.mxu0 %v331
        %711 = vmatpush.msra.mxu0 %v330
        %712 = vmatpush.msra.mxu0 %v329
        %713 = vmatmul.f32.gmra.mxu0 %v692
        %v714 = vpop.f32.mrf.mxu0
        %v715 = vadd.f32 0.0, %v714
        %716 = vmatmul.f32.gmra.mxu0 %v693
        %v717 = vpop.f32.mrf.mxu0
        %v718 = vadd.f32 0.0, %v717
        %719 = vmatmul.f32.gmra.mxu0 %v694
        %v720 = vpop.f32.mrf.mxu0
        %v721 = vadd.f32 0.0, %v720
        %722 = vmatmul.f32.gmra.mxu0 %v695
        %v723 = vpop.f32.mrf.mxu0
        %v724 = vadd.f32 0.0, %v723
        %725 = vmatmul.f32.gmra.mxu0 %v696
        %v726 = vpop.f32.mrf.mxu0
        %v727 = vadd.f32 0.0, %v726
        %728 = vdwg.mxu0
        %v729 = vadd.f32 %v553, %v715
        %v730 = vadd.f32 %v556, %v718
        %v731 = vadd.f32 %v559, %v721
        %v732 = vadd.f32 %v562, %v724
        %v733 = vadd.f32 %v565, %v727
        %v734 = vadd.f32 %v729, %v570
        %v735 = vadd.f32 %v730, %v575
        %v736 = vadd.f32 %v731, %v580
        %v737 = vadd.f32 %v732, %v585
        %v738 = vadd.f32 %v733, %v590
        %v739 = vmax.f32 %v734, %v738
        %v740 = vmax.f32 %v739, %v735
        %v741 = vmax.f32 %v736, %v737
        %v742 = vmax.f32 %v740, %v741
        %v743 = vrot.slane %v742, 4
        %v744 = vmax.f32 %v742, %v743
        %v745 = vrot.slane %v744, 2
        %v746 = vmax.f32 %v744, %v745
        %v747 = vrot.slane %v746, 1
        %v748 = vmax.f32 %v746, %v747
        %v749 = vsub.f32 %v734, %v748
        %v750 = vsub.f32 %v735, %v748
        %v751 = vsub.f32 %v736, %v748
        %v752 = vsub.f32 %v737, %v748
        %v753 = vsub.f32 %v738, %v748
        %v754 = vmul.f32 %v749, 1.442695
        %v755 = vpow.pop %v754
        %v756 = vmul.f32 %v750, 1.442695
        %v757 = vpow.pop %v756
        %v758 = vmul.f32 %v751, 1.442695
        %v759 = vpow.pop %v758
        %v760 = vmul.f32 %v752, 1.442695
        %v761 = vpow.pop %v760
        %v762 = vmul.f32 %v753, 1.442695
        %v763 = vpow.pop %v762
        %v764 = vadd.f32 %v755, %v757
        %v765 = vadd.f32 %v764, %v759
        %v766 = vadd.f32 %v765, %v761
        %v767 = vadd.f32 %v766, %v763
        %v768 = vrot.slane %v767, 4
        %v769 = vadd.f32 %v767, %v768
        %v770 = vrot.slane %v769, 2
        %v771 = vadd.f32 %v769, %v770
        %v772 = vrot.slane %v771, 1
        %v773 = vadd.f32 %v771, %v772
        %v774 = vrcp.pop %v773
        %v775 = vmul.f32 %v755, %v774
        %v776 = vmul.f32 %v757, %v774
        %v777 = vmul.f32 %v759, %v774
        %v778 = vmul.f32 %v761, %v774
        %v779 = vmul.f32 %v763, %v774
        %v780 = vmul.f32 %v775, %v466
        %v781 = vmul.f32 %v776, %v469
        %v782 = vmul.f32 %v777, %v472
        %v783 = vmul.f32 %v778, %v475
        %v784 = vmul.f32 %v779, %v478
        %v785 = vadd.f32 %v780, %v781
        %v786 = vadd.f32 %v785, %v782
        %v787 = vadd.f32 %v786, %v783
        %v788 = vadd.f32 %v787, %v784
        %v789 = vrot.slane %v788, 4
        %v790 = vadd.f32 %v788, %v789
        %v791 = vrot.slane %v790, 2
        %v792 = vadd.f32 %v790, %v791
        %v793 = vrot.slane %v792, 1
        %v794 = vadd.f32 %v792, %v793
        %v795 = vadd.f32 %v794, %v345
        %v796 = vmul.f32 %v795, %v795
        %797 = vmatpush.msra.mxu0 %v344
        %798 = vmatpush.msra.mxu0 %v343
        %799 = vmatpush.msra.mxu0 %v342
        %800 = vmatpush.msra.mxu0 %v341
        %801 = vmatpush.msra.mxu0 %v340
        %802 = vmatpush.msra.mxu0 %v339
        %803 = vmatpush.msra.mxu0 %v338
        %804 = vmatpush.msra.mxu0 %v337
        %805 = vmatpush.msra.mxu0 %v336
        %806 = vmatpush.msra.mxu0 %v335
        %807 = vmatpush.msra.mxu0 %v334
        %808 = vmatpush.msra.mxu0 %v333
        %809 = vmatpush.msra.mxu0 %v332
        %810 = vmatpush.msra.mxu0 %v331
        %811 = vmatpush.msra.mxu0 %v330
        %812 = vmatpush.msra.mxu0 %v329
        %813 = vmatmul.f32.gmra.mxu0 %v796
        %v814 = vpop.f32.mrf.mxu0
        %v815 = vadd.f32 0.0, %v814
        %816 = vdwg.mxu0
        %v817 = vadd.f32 %v815, 1e-12
        %v818 = vrsqrt.pop %v817
        %v819 = vmul.f32 %v818, %v817
        %v820 = vmul.f32 %v819, %v818
        %v821 = vmul.f32 0.5, %v820
        %v822 = vsub.f32 1.5, %v821
        %v823 = vmul.f32 %v818, %v822
        %vm824 = vweird.f32 %v817
        %vm825 = vweird.f32 %v818
        %vm826 = vmor %vm824, %vm825
        %v827 = vsel %vm826, %v818, %v823
        %v828 = vmul.f32 %v815, %v827
        %v829 = vadd.f32 %v815, 1.0
        %v830 = vrcp.pop %v829
        %v831 = vmul.f32 %v828, %v830
        %v832 = vmul.f32 %v795, %v831
        %vm833 = vcmp.eq.s32.totalorder %v352, 0
        %v834 = vsel %vm833, 1, 0
        %vm835 = vcmp.eq.s32.totalorder %v834, 1
        %v836 = vperm.slane %v832, 0
        %v837 = vsel %vm835, %v836, 0.0
        %v838 = vadd.f32 %v837, 0.0
        %s839 = scalar_lea.vmem %s250, 120 [#allocation2]
        %v840 = vld [vmem:[%s839] sm:$0xff]
        %v841 = vld [vmem:[%s839 + $0x8] sm:$0xff]
        %v842 = vld [vmem:[%s839 + $0x10] sm:$0xff]
        %v843 = vld [vmem:[%s839 + $0x18] sm:$0xff]
        %v844 = vld [vmem:[%s839 + $0x20] sm:$0xff]
        %v845 = vld [vmem:[%s839 + $0x28] sm:$0xff]
        %v846 = vld [vmem:[%s839 + $0x30] sm:$0xff]
        %v847 = vld [vmem:[%s839 + $0x38] sm:$0xff]
        %v848 = vld [vmem:[%s839 + $0x40] sm:$0xff]
        %v849 = vld [vmem:[%s839 + $0x48] sm:$0xff]
        %v850 = vld [vmem:[%s839 + $0x50] sm:$0xff]
        %v851 = vld [vmem:[%s839 + $0x58] sm:$0xff]
        %v852 = vld [vmem:[%s839 + $0x60] sm:$0xff]
        %v853 = vld [vmem:[%s839 + $0x68] sm:$0xff]
        %v854 = vld [vmem:[%s839 + $0x70] sm:$0xff]
        %v856 = vsel %vm368, %v842, 0
        %v859 = vsel %vm368, %v845, 0
        %v862 = vsel %vm368, %v848, 0
        %v865 = vsel %vm368, %v851, 0
        %v868 = vsel %vm368, %v854, 0
        %870 = vmatpush.msra.mxu0 %v308
        %871 = vmatpush.msra.mxu0 %v307
        %872 = vmatpush.msra.mxu0 %v306
        %873 = vmatpush.msra.mxu0 %v305
        %874 = vmatpush.msra.mxu0 %v304
        %875 = vmatpush.msra.mxu0 %v303
        %876 = vmatpush.msra.mxu0 %v302
        %877 = vmatpush.msra.mxu0 %v301
        %878 = vmatpush.msra.mxu0 %v300
        %879 = vmatpush.msra.mxu0 %v299
        %880 = vmatpush.msra.mxu0 %v298
        %881 = vmatpush.msra.mxu0 %v297
        %882 = vmatpush.msra.mxu0 %v296
        %883 = vmatpush.msra.mxu0 %v295
        %884 = vmatpush.msra.mxu0 %v294
        %885 = vmatpush.msra.mxu0 %v293
        %886 = vmatmul.f32.gmra.mxu0 %v840
        %v887 = vpop.f32.mrf.mxu0
        %v888 = vadd.f32 0.0, %v887
        %889 = vmatmul.f32.gmra.mxu0 %v843
        %v890 = vpop.f32.mrf.mxu0
        %v891 = vadd.f32 0.0, %v890
        %892 = vmatmul.f32.gmra.mxu0 %v846
        %v893 = vpop.f32.mrf.mxu0
        %v894 = vadd.f32 0.0, %v893
        %895 = vmatmul.f32.gmra.mxu0 %v849
        %v896 = vpop.f32.mrf.mxu0
        %v897 = vadd.f32 0.0, %v896
        %898 = vmatmul.f32.gmra.mxu0 %v852
        %v899 = vpop.f32.mrf.mxu0
        %v900 = vadd.f32 0.0, %v899
        %901 = vdwg.mxu0
        %902 = vmatpush.msra.mxu0 %v324
        %903 = vmatpush.msra.mxu0 %v323
        %904 = vmatpush.msra.mxu0 %v322
        %905 = vmatpush.msra.mxu0 %v321
        %906 = vmatpush.msra.mxu0 %v320
        %907 = vmatpush.msra.mxu0 %v319
        %908 = vmatpush.msra.mxu0 %v318
        %909 = vmatpush.msra.mxu0 %v317
        %910 = vmatpush.msra.mxu0 %v316
        %911 = vmatpush.msra.mxu0 %v315
        %912 = vmatpush.msra.mxu0 %v314
        %913 = vmatpush.msra.mxu0 %v313
        %914 = vmatpush.msra.mxu0 %v312
        %915 = vmatpush.msra.mxu0 %v311
        %916 = vmatpush.msra.mxu0 %v310
        %917 = vmatpush.msra.mxu0 %v309
        %918 = vmatmul.f32.gmra.mxu0 %v841
        %v919 = vpop.f32.mrf.mxu0
        %v920 = vadd.f32 %v888, %v919
        %921 = vmatmul.f32.gmra.mxu0 %v844
        %v922 = vpop.f32.mrf.mxu0
        %v923 = vadd.f32 %v891, %v922
        %924 = vmatmul.f32.gmra.mxu0 %v847
        %v925 = vpop.f32.mrf.mxu0
        %v926 = vadd.f32 %v894, %v925
        %927 = vmatmul.f32.gmra.mxu0 %v850
        %v928 = vpop.f32.mrf.mxu0
        %v929 = vadd.f32 %v897, %v928
        %930 = vmatmul.f32.gmra.mxu0 %v853
        %v931 = vpop.f32.mrf.mxu0
        %v932 = vadd.f32 %v900, %v931
        %933 = vdwg.mxu0
        %934 = vmatpush.msra.mxu0 0.0
        %935 = vmatpush.msra.mxu0 0.0
        %936 = vmatpush.msra.mxu0 0.0
        %937 = vmatpush.msra.mxu0 0.0
        %938 = vmatpush.msra.mxu0 0.0
        %939 = vmatpush.msra.mxu0 0.0
        %940 = vmatpush.msra.mxu0 0.0
        %941 = vmatpush.msra.mxu0 0.0
        %942 = vmatpush.msra.mxu0 0.0
        %943 = vmatpush.msra.mxu0 0.0
        %944 = vmatpush.msra.mxu0 0.0
        %945 = vmatpush.msra.mxu0 0.0
        %946 = vmatpush.msra.mxu0 %v328
        %947 = vmatpush.msra.mxu0 %v327
        %948 = vmatpush.msra.mxu0 %v326
        %949 = vmatpush.msra.mxu0 %v325
        %950 = vmatmul.f32.gmra.mxu0 %v856
        %v951 = vpop.f32.mrf.mxu0
        %v952 = vadd.f32 %v920, %v951
        %953 = vmatmul.f32.gmra.mxu0 %v859
        %v954 = vpop.f32.mrf.mxu0
        %v955 = vadd.f32 %v923, %v954
        %956 = vmatmul.f32.gmra.mxu0 %v862
        %v957 = vpop.f32.mrf.mxu0
        %v958 = vadd.f32 %v926, %v957
        %959 = vmatmul.f32.gmra.mxu0 %v865
        %v960 = vpop.f32.mrf.mxu0
        %v961 = vadd.f32 %v929, %v960
        %962 = vmatmul.f32.gmra.mxu0 %v868
        %v963 = vpop.f32.mrf.mxu0
        %v964 = vadd.f32 %v932, %v963
        %965 = vdwg.mxu0
        %v966 = vadd.f32 %v952, %v955
        %v967 = vadd.f32 %v966, %v958
        %v968 = vadd.f32 %v967, %v961
        %v969 = vadd.f32 %v968, %v964
        %v970 = vrot.slane %v969, 4
        %v971 = vadd.f32 %v969, %v970
        %v972 = vrot.slane %v971, 2
        %v973 = vadd.f32 %v971, %v972
        %v974 = vrot.slane %v973, 1
        %v975 = vadd.f32 %v973, %v974
        %v976 = vmul.f32 %v975, 0.027777778
        %v977 = vadd.f32 %v976, %v345
        %v978 = vmul.f32 %v977, %v977
        %979 = vmatpush.msra.mxu0 %v344
        %980 = vmatpush.msra.mxu0 %v343
        %981 = vmatpush.msra.mxu0 %v342
        %982 = vmatpush.msra.mxu0 %v341
        %983 = vmatpush.msra.mxu0 %v340
        %984 = vmatpush.msra.mxu0 %v339
        %985 = vmatpush.msra.mxu0 %v338
        %986 = vmatpush.msra.mxu0 %v337
        %987 = vmatpush.msra.mxu0 %v336
        %988 = vmatpush.msra.mxu0 %v335
        %989 = vmatpush.msra.mxu0 %v334
        %990 = vmatpush.msra.mxu0 %v333
        %991 = vmatpush.msra.mxu0 %v332
        %992 = vmatpush.msra.mxu0 %v331
        %993 = vmatpush.msra.mxu0 %v330
        %994 = vmatpush.msra.mxu0 %v329
        %995 = vmatmul.f32.gmra.mxu0 %v978
        %v996 = vpop.f32.mrf.mxu0
        %v997 = vadd.f32 0.0, %v996
        %998 = vdwg.mxu0
        %v999 = vadd.f32 %v997, 1e-12
        %v1000 = vrsqrt.pop %v999
        %v1001 = vmul.f32 %v1000, %v999
        %v1002 = vmul.f32 %v1001, %v1000
        %v1003 = vmul.f32 0.5, %v1002
        %v1004 = vsub.f32 1.5, %v1003
        %v1005 = vmul.f32 %v1000, %v1004
        %vm1006 = vweird.f32 %v999
        %vm1007 = vweird.f32 %v1000
        %vm1008 = vmor %vm1006, %vm1007
        %v1009 = vsel %vm1008, %v1000, %v1005
        %v1010 = vmul.f32 %v997, %v1009
        %v1011 = vadd.f32 %v997, 1.0
        %v1012 = vrcp.pop %v1011
        %v1013 = vmul.f32 %v1010, %v1012
        %v1014 = vmul.f32 %v977, %v1013
        %v1015 = vperm.slane %v1014, 0
        %v1016 = vmul.f32 %v952, %v1015
        %v1017 = vmul.f32 %v955, %v1015
        %v1018 = vmul.f32 %v958, %v1015
        %v1019 = vmul.f32 %v961, %v1015
        %v1020 = vmul.f32 %v964, %v1015
        %1021 = vmatpush.msra.mxu0 %v344
        %1022 = vmatpush.msra.mxu0 %v343
        %1023 = vmatpush.msra.mxu0 %v342
        %1024 = vmatpush.msra.mxu0 %v341
        %1025 = vmatpush.msra.mxu0 %v340
        %1026 = vmatpush.msra.mxu0 %v339
        %1027 = vmatpush.msra.mxu0 %v338
        %1028 = vmatpush.msra.mxu0 %v337
        %1029 = vmatpush.msra.mxu0 %v336
        %1030 = vmatpush.msra.mxu0 %v335
        %1031 = vmatpush.msra.mxu0 %v334
        %1032 = vmatpush.msra.mxu0 %v333
        %1033 = vmatpush.msra.mxu0 %v332
        %1034 = vmatpush.msra.mxu0 %v331
        %1035 = vmatpush.msra.mxu0 %v330
        %1036 = vmatpush.msra.mxu0 %v329
        %1037 = vmatmul.f32.gmra.mxu0 %v1016
        %v1038 = vpop.f32.mrf.mxu0
        %v1039 = vadd.f32 0.0, %v1038
        %1040 = vmatmul.f32.gmra.mxu0 %v1017
        %v1041 = vpop.f32.mrf.mxu0
        %v1042 = vadd.f32 0.0, %v1041
        %1043 = vmatmul.f32.gmra.mxu0 %v1018
        %v1044 = vpop.f32.mrf.mxu0
        %v1045 = vadd.f32 0.0, %v1044
        %1046 = vmatmul.f32.gmra.mxu0 %v1019
        %v1047 = vpop.f32.mrf.mxu0
        %v1048 = vadd.f32 0.0, %v1047
        %1049 = vmatmul.f32.gmra.mxu0 %v1020
        %v1050 = vpop.f32.mrf.mxu0
        %v1051 = vadd.f32 0.0, %v1050
        %1052 = vdwg.mxu0
        %v1053 = vadd.f32 %v1039, %v570
        %v1054 = vadd.f32 %v1042, %v575
        %v1055 = vadd.f32 %v1045, %v580
        %v1056 = vadd.f32 %v1048, %v585
        %v1057 = vadd.f32 %v1051, %v590
        %v1058 = vmax.f32 %v1053, %v1057
        %v1059 = vmax.f32 %v1058, %v1054
        %v1060 = vmax.f32 %v1055, %v1056
        %v1061 = vmax.f32 %v1059, %v1060
        %v1062 = vrot.slane %v1061, 4
        %v1063 = vmax.f32 %v1061, %v1062
        %v1064 = vrot.slane %v1063, 2
        %v1065 = vmax.f32 %v1063, %v1064
        %v1066 = vrot.slane %v1065, 1
        %v1067 = vmax.f32 %v1065, %v1066
        %v1068 = vsub.f32 %v1053, %v1067
        %v1069 = vsub.f32 %v1054, %v1067
        %v1070 = vsub.f32 %v1055, %v1067
        %v1071 = vsub.f32 %v1056, %v1067
        %v1072 = vsub.f32 %v1057, %v1067
        %v1073 = vmul.f32 %v1068, 1.442695
        %v1074 = vpow.pop %v1073
        %v1075 = vmul.f32 %v1069, 1.442695
        %v1076 = vpow.pop %v1075
        %v1077 = vmul.f32 %v1070, 1.442695
        %v1078 = vpow.pop %v1077
        %v1079 = vmul.f32 %v1071, 1.442695
        %v1080 = vpow.pop %v1079
        %v1081 = vmul.f32 %v1072, 1.442695
        %v1082 = vpow.pop %v1081
        %v1083 = vadd.f32 %v1074, %v1076
        %v1084 = vadd.f32 %v1083, %v1078
        %v1085 = vadd.f32 %v1084, %v1080
        %v1086 = vadd.f32 %v1085, %v1082
        %v1087 = vrot.slane %v1086, 4
        %v1088 = vadd.f32 %v1086, %v1087
        %v1089 = vrot.slane %v1088, 2
        %v1090 = vadd.f32 %v1088, %v1089
        %v1091 = vrot.slane %v1090, 1
        %v1092 = vadd.f32 %v1090, %v1091
        %v1093 = vrcp.pop %v1092
        %v1094 = vmul.f32 %v1074, %v1093
        %v1095 = vmul.f32 %v1076, %v1093
        %v1096 = vmul.f32 %v1078, %v1093
        %v1097 = vmul.f32 %v1080, %v1093
        %v1098 = vmul.f32 %v1082, %v1093
        %v1099 = vmul.f32 %v1094, %v952
        %v1100 = vmul.f32 %v1095, %v955
        %v1101 = vmul.f32 %v1096, %v958
        %v1102 = vmul.f32 %v1097, %v961
        %v1103 = vmul.f32 %v1098, %v964
        %v1104 = vadd.f32 %v1099, %v1100
        %v1105 = vadd.f32 %v1104, %v1101
        %v1106 = vadd.f32 %v1105, %v1102
        %v1107 = vadd.f32 %v1106, %v1103
        %v1108 = vrot.slane %v1107, 4
        %v1109 = vadd.f32 %v1107, %v1108
        %v1110 = vrot.slane %v1109, 2
        %v1111 = vadd.f32 %v1109, %v1110
        %v1112 = vrot.slane %v1111, 1
        %v1113 = vadd.f32 %v1111, %v1112
        %v1114 = vadd.f32 %v1113, %v345
        %v1115 = vmul.f32 %v1114, %v1114
        %1116 = vmatpush.msra.mxu0 %v344
        %1117 = vmatpush.msra.mxu0 %v343
        %1118 = vmatpush.msra.mxu0 %v342
        %1119 = vmatpush.msra.mxu0 %v341
        %1120 = vmatpush.msra.mxu0 %v340
        %1121 = vmatpush.msra.mxu0 %v339
        %1122 = vmatpush.msra.mxu0 %v338
        %1123 = vmatpush.msra.mxu0 %v337
        %1124 = vmatpush.msra.mxu0 %v336
        %1125 = vmatpush.msra.mxu0 %v335
        %1126 = vmatpush.msra.mxu0 %v334
        %1127 = vmatpush.msra.mxu0 %v333
        %1128 = vmatpush.msra.mxu0 %v332
        %1129 = vmatpush.msra.mxu0 %v331
        %1130 = vmatpush.msra.mxu0 %v330
        %1131 = vmatpush.msra.mxu0 %v329
        %1132 = vmatmul.f32.gmra.mxu0 %v1115
        %v1133 = vpop.f32.mrf.mxu0
        %v1134 = vadd.f32 0.0, %v1133
        %1135 = vdwg.mxu0
        %v1136 = vadd.f32 %v1134, 1e-12
        %v1137 = vrsqrt.pop %v1136
        %v1138 = vmul.f32 %v1137, %v1136
        %v1139 = vmul.f32 %v1138, %v1137
        %v1140 = vmul.f32 0.5, %v1139
        %v1141 = vsub.f32 1.5, %v1140
        %v1142 = vmul.f32 %v1137, %v1141
        %vm1143 = vweird.f32 %v1136
        %vm1144 = vweird.f32 %v1137
        %vm1145 = vmor %vm1143, %vm1144
        %v1146 = vsel %vm1145, %v1137, %v1142
        %v1147 = vmul.f32 %v1134, %v1146
        %v1148 = vadd.f32 %v1134, 1.0
        %v1149 = vrcp.pop %v1148
        %v1150 = vmul.f32 %v1147, %v1149
        %v1151 = vmul.f32 %v1114, %v1150
        %v1152 = vperm.slane %v1151, 0
        %v1153 = vmul.f32 %v952, %v1152
        %v1154 = vmul.f32 %v955, %v1152
        %v1155 = vmul.f32 %v958, %v1152
        %v1156 = vmul.f32 %v961, %v1152
        %v1157 = vmul.f32 %v964, %v1152
        %1158 = vmatpush.msra.mxu0 %v344
        %1159 = vmatpush.msra.mxu0 %v343
        %1160 = vmatpush.msra.mxu0 %v342
        %1161 = vmatpush.msra.mxu0 %v341
        %1162 = vmatpush.msra.mxu0 %v340
        %1163 = vmatpush.msra.mxu0 %v339
        %1164 = vmatpush.msra.mxu0 %v338
        %1165 = vmatpush.msra.mxu0 %v337
        %1166 = vmatpush.msra.mxu0 %v336
        %1167 = vmatpush.msra.mxu0 %v335
        %1168 = vmatpush.msra.mxu0 %v334
        %1169 = vmatpush.msra.mxu0 %v333
        %1170 = vmatpush.msra.mxu0 %v332
        %1171 = vmatpush.msra.mxu0 %v331
        %1172 = vmatpush.msra.mxu0 %v330
        %1173 = vmatpush.msra.mxu0 %v329
        %1174 = vmatmul.f32.gmra.mxu0 %v1153
        %v1175 = vpop.f32.mrf.mxu0
        %v1176 = vadd.f32 0.0, %v1175
        %1177 = vmatmul.f32.gmra.mxu0 %v1154
        %v1178 = vpop.f32.mrf.mxu0
        %v1179 = vadd.f32 0.0, %v1178
        %1180 = vmatmul.f32.gmra.mxu0 %v1155
        %v1181 = vpop.f32.mrf.mxu0
        %v1182 = vadd.f32 0.0, %v1181
        %1183 = vmatmul.f32.gmra.mxu0 %v1156
        %v1184 = vpop.f32.mrf.mxu0
        %v1185 = vadd.f32 0.0, %v1184
        %1186 = vmatmul.f32.gmra.mxu0 %v1157
        %v1187 = vpop.f32.mrf.mxu0
        %v1188 = vadd.f32 0.0, %v1187
        %1189 = vdwg.mxu0
        %v1190 = vadd.f32 %v1039, %v1176
        %v1191 = vadd.f32 %v1042, %v1179
        %v1192 = vadd.f32 %v1045, %v1182
        %v1193 = vadd.f32 %v1048, %v1185
        %v1194 = vadd.f32 %v1051, %v1188
        %v1195 = vadd.f32 %v1190, %v570
        %v1196 = vadd.f32 %v1191, %v575
        %v1197 = vadd.f32 %v1192, %v580
        %v1198 = vadd.f32 %v1193, %v585
        %v1199 = vadd.f32 %v1194, %v590
        %v1200 = vmax.f32 %v1195, %v1199
        %v1201 = vmax.f32 %v1200, %v1196
        %v1202 = vmax.f32 %v1197, %v1198
        %v1203 = vmax.f32 %v1201, %v1202
        %v1204 = vrot.slane %v1203, 4
        %v1205 = vmax.f32 %v1203, %v1204
        %v1206 = vrot.slane %v1205, 2
        %v1207 = vmax.f32 %v1205, %v1206
        %v1208 = vrot.slane %v1207, 1
        %v1209 = vmax.f32 %v1207, %v1208
        %v1210 = vsub.f32 %v1195, %v1209
        %v1211 = vsub.f32 %v1196, %v1209
        %v1212 = vsub.f32 %v1197, %v1209
        %v1213 = vsub.f32 %v1198, %v1209
        %v1214 = vsub.f32 %v1199, %v1209
        %v1215 = vmul.f32 %v1210, 1.442695
        %v1216 = vpow.pop %v1215
        %v1217 = vmul.f32 %v1211, 1.442695
        %v1218 = vpow.pop %v1217
        %v1219 = vmul.f32 %v1212, 1.442695
        %v1220 = vpow.pop %v1219
        %v1221 = vmul.f32 %v1213, 1.442695
        %v1222 = vpow.pop %v1221
        %v1223 = vmul.f32 %v1214, 1.442695
        %v1224 = vpow.pop %v1223
        %v1225 = vadd.f32 %v1216, %v1218
        %v1226 = vadd.f32 %v1225, %v1220
        %v1227 = vadd.f32 %v1226, %v1222
        %v1228 = vadd.f32 %v1227, %v1224
        %v1229 = vrot.slane %v1228, 4
        %v1230 = vadd.f32 %v1228, %v1229
        %v1231 = vrot.slane %v1230, 2
        %v1232 = vadd.f32 %v1230, %v1231
        %v1233 = vrot.slane %v1232, 1
        %v1234 = vadd.f32 %v1232, %v1233
        %v1235 = vrcp.pop %v1234
        %v1236 = vmul.f32 %v1216, %v1235
        %v1237 = vmul.f32 %v1218, %v1235
        %v1238 = vmul.f32 %v1220, %v1235
        %v1239 = vmul.f32 %v1222, %v1235
        %v1240 = vmul.f32 %v1224, %v1235
        %v1241 = vmul.f32 %v1236, %v952
        %v1242 = vmul.f32 %v1237, %v955
        %v1243 = vmul.f32 %v1238, %v958
        %v1244 = vmul.f32 %v1239, %v961
        %v1245 = vmul.f32 %v1240, %v964
        %v1246 = vadd.f32 %v1241, %v1242
        %v1247 = vadd.f32 %v1246, %v1243
        %v1248 = vadd.f32 %v1247, %v1244
        %v1249 = vadd.f32 %v1248, %v1245
        %v1250 = vrot.slane %v1249, 4
        %v1251 = vadd.f32 %v1249, %v1250
        %v1252 = vrot.slane %v1251, 2
        %v1253 = vadd.f32 %v1251, %v1252
        %v1254 = vrot.slane %v1253, 1
        %v1255 = vadd.f32 %v1253, %v1254
        %v1256 = vadd.f32 %v1255, %v345
        %v1257 = vmul.f32 %v1256, %v1256
        %1258 = vmatpush.msra.mxu0 %v344
        %1259 = vmatpush.msra.mxu0 %v343
        %1260 = vmatpush.msra.mxu0 %v342
        %1261 = vmatpush.msra.mxu0 %v341
        %1262 = vmatpush.msra.mxu0 %v340
        %1263 = vmatpush.msra.mxu0 %v339
        %1264 = vmatpush.msra.mxu0 %v338
        %1265 = vmatpush.msra.mxu0 %v337
        %1266 = vmatpush.msra.mxu0 %v336
        %1267 = vmatpush.msra.mxu0 %v335
        %1268 = vmatpush.msra.mxu0 %v334
        %1269 = vmatpush.msra.mxu0 %v333
        %1270 = vmatpush.msra.mxu0 %v332
        %1271 = vmatpush.msra.mxu0 %v331
        %1272 = vmatpush.msra.mxu0 %v330
        %1273 = vmatpush.msra.mxu0 %v329
        %1274 = vmatmul.f32.gmra.mxu0 %v1257
        %v1275 = vpop.f32.mrf.mxu0
        %v1276 = vadd.f32 0.0, %v1275
        %1277 = vdwg.mxu0
        %v1278 = vadd.f32 %v1276, 1e-12
        %v1279 = vrsqrt.pop %v1278
        %v1280 = vmul.f32 %v1279, %v1278
        %v1281 = vmul.f32 %v1280, %v1279
        %v1282 = vmul.f32 0.5, %v1281
        %v1283 = vsub.f32 1.5, %v1282
        %v1284 = vmul.f32 %v1279, %v1283
        %vm1285 = vweird.f32 %v1278
        %vm1286 = vweird.f32 %v1279
        %vm1287 = vmor %vm1285, %vm1286
        %v1288 = vsel %vm1287, %v1279, %v1284
        %v1289 = vmul.f32 %v1276, %v1288
        %v1290 = vadd.f32 %v1276, 1.0
        %v1291 = vrcp.pop %v1290
        %v1292 = vmul.f32 %v1289, %v1291
        %v1293 = vmul.f32 %v1256, %v1292
        %vm1294 = vcmp.eq.s32.totalorder %v352, 1
        %v1295 = vsel %vm1294, 1, 0
        %vm1296 = vcmp.eq.s32.totalorder %v1295, 1
        %v1297 = vperm.slane %v1293, 0
        %v1298 = vsel %vm1296, %v1297, 0.0
        %v1299 = vadd.f32 %v838, %v1298
        %1300 = vst [vmem:[%s292] sm:$0x3] %v1299
        %s1301 = sand.u32 %s142, 1
        %s1302 = scalar_lea.sflag [#allocation4], %s1301
        %s1303 = sand.u32 %s142, 1
        %s1304 = smul.addr %s1303, 2
        %s1305 = scalar_lea.vmem [#allocation10], %s1304
        // Predicated region
        $region57: #{tpu_custom_call.1} parent=39 // pred_check
          %p1306 = pneg %p152
        $region58: #{tpu_custom_call.1} parent=39 // pred_check_branch
          %1308 = sbr.rel (%p1306) target = $region60
        $region59: #{tpu_custom_call.1} parent=39 // pred_region
          %1310 = vsyncadd %s1302, 0
          %s1311 = smul.addr %s24, 2
          %s1312 = scalar_lea.hbm %s5, %s1311
          %s1314 = sshll.u32 %s1305, 4
          %s1315 = int_to_ptr.vmem [resolvable:$true] %s1314
          %s1316 = sshll.u32 %s1312, 4
          %s1317 = int_to_ptr.hbm [resolvable:$true] %s1316
          %1319 = dma.vmem_to_hbm [thread:$0]  %s1315, 32, %s1317, %s1302
        $region60: #{tpu_custom_call.1} parent=39 // pred_fallthru
          _
      $region40: #{tpu_custom_call.1} parent=5 // pred_fallthru
        _
      %p1320 = scmp.le.s32.totalorder 2, %s19
      // Predicated region
      $region61: #{tpu_custom_call.1} parent=5 // pred_check
        %p1321 = pneg %p1320
      $region62: #{tpu_custom_call.1} parent=5 // pred_check_branch
        %1323 = sbr.rel (%p1321) target = $region64
      $region63: #{tpu_custom_call.1} parent=5 // pred_region
        %s1324 = ssub.s32 %s19, 2
        // Predicated region
        $region65: #{tpu_custom_call.1} parent=63 // pred_check
          %p1325 = pneg %p158
        $region66: #{tpu_custom_call.1} parent=63 // pred_check_branch
          %1327 = sbr.rel (%p1325) target = $region68
        $region67: #{tpu_custom_call.1} parent=63 // pred_region
          %s1328 = sand.u32 %s143, 1
          %s1329 = scalar_lea.sflag [#allocation4], %s1328
          %s1330 = sand.u32 %s143, 1
          %s1331 = smul.addr %s1330, 2
          %s1332 = scalar_lea.vmem [#allocation10], %s1331
          %1334 = dma.done %s1329, 32
        $region68: #{tpu_custom_call.1} parent=63 // pred_fallthru
          _
      $region64: #{tpu_custom_call.1} parent=5 // pred_fallthru
        _
    $region6: #{tpu_custom_call.1} parent=1 // loop_footer
      %s23 = sadd.s32 1, %s19
    $region7: #{tpu_custom_call.1} parent=1 // loop_footer_branch
      %18 = sbr.rel target = $region3
    $region8: #{tpu_custom_call.1} parent=1 // loop_exit
      _
    %1335 = vsyncpa [#allocation3], 1
    %s1336 = scalar_lea.sflag [#allocation3], 1
    %1337 = vsyncpa %s1336, 1
    %1338 = vsyncpa [#allocation6], 1
    %1339 = vsyncpa [#allocation9], 1
    %1340 = vsyncpa [#allocation4], 1
    %s1341 = scalar_lea.sflag [#allocation4], 1
    %1342 = vsyncpa %s1341, 1

</llo_original>
